<compile_context>
chip_gen: v7x
topology: tpu7x:2x2x1
jax: 0.10.0
libtpu: 0.0.40
codegen_flags: <defaults>
</compile_context>

<pallas_src>
import math

import jax
import jax.numpy as jnp
from jax.experimental import pallas as pl
from jax.experimental.pallas import tpu as pltpu


def _sdpa_kernel(q_ref, k_ref, v_ref, x2_ref, qk_ref, attn_ref, out_ref):
    # q_ref: (TM, D), k_ref: (N, D), v_ref: (N, Dv)
    # x2_ref / qk_ref / attn_ref: (TM, N)   (batch dim squeezed)
    # out_ref: (TM, Dv)
    d = q_ref.shape[-1]
    scale = 1.0 / math.sqrt(d)

    # Fold the softmax scale into q before the MXU (off the post-matmul path).
    q_scaled = q_ref[...] * scale

    # First matmul on the MXU: f32 in / f32 accumulate.  The einsum contracts
    # the last dims of both operands, so no explicit transpose of k is built.
    scores = jnp.einsum(
        "md,nd->mn", q_scaled, k_ref[...], preferred_element_type=jnp.float32
    )

    # Bias add: batch already squeezed, so this is a pure per-vreg VPU add.
    qk = scores + x2_ref[...]
    qk_ref[...] = qk.astype(qk_ref.dtype)

    # Numerically stable softmax along the (128-wide) lane axis.
    m = jnp.max(qk, axis=-1, keepdims=True)
    e = jnp.exp(qk - m)
    s = jnp.sum(e, axis=-1, keepdims=True)
    attn = e / s  # exact divide: rows sum to 1 (review correctness concern)
    attn_ref[...] = attn.astype(attn_ref.dtype)

    # Second matmul: (TM, N) @ (N, Dv) on the MXU, f32 in / f32 acc.
    out = jnp.dot(attn, v_ref[...], preferred_element_type=jnp.float32)
    out_ref[...] = out.astype(out_ref.dtype)


def model_forward(x1, x2, q, k, v, *, tile_m=256):
    """Mirrors Model.forward(x1, x2); x1 is unused (as in the PyTorch code)."""
    del x1  # unused by the original forward
    M, D = q.shape
    N, _ = k.shape
    _, Dv = v.shape
    B = x2.shape[0]

    tile_m = min(tile_m, M)
    assert M % tile_m == 0, "M must be divisible by the M-tile"

    # grid = (B, M // tile_m) = (2, 1) at the default sizes: both axes are
    # fully independent ("parallel"), so v7x's 2 TensorCores each take one
    # batch step; v5e/v6e just loop.
    grid = (B, M // tile_m)

    out_shapes = (
        jax.ShapeDtypeStruct((B, M, N), jnp.float32),   # qk
        jax.ShapeDtypeStruct((B, M, N), jnp.float32),   # attn_weight
        jax.ShapeDtypeStruct((B, M, Dv), jnp.float32),  # output
    )

    return pl.pallas_call(
        _sdpa_kernel,
        out_shape=out_shapes,
        grid=grid,
        in_specs=[
            # q: tiled along M, shared across batch (block index grid-invariant
            # along b -> its DMA is not re-issued per batch step).
            pl.BlockSpec((tile_m, D), lambda b, i: (i, 0)),
            # k, v: whole (small) arrays, fetched once.
            pl.BlockSpec((N, D), lambda b, i: (0, 0)),
            pl.BlockSpec((N, Dv), lambda b, i: (0, 0)),
            # x2: batch dim squeezed out of the kernel view.
            pl.BlockSpec((None, tile_m, N), lambda b, i: (b, i, 0)),
        ],
        out_specs=(
            pl.BlockSpec((None, tile_m, N), lambda b, i: (b, i, 0)),
            pl.BlockSpec((None, tile_m, N), lambda b, i: (b, i, 0)),
            pl.BlockSpec((None, tile_m, Dv), lambda b, i: (b, i, 0)),
        ),
        compiler_params=pltpu.CompilerParams(
            # both grid axes are fully independent -> shard across TCs on v7x
            dimension_semantics=("parallel", "parallel"),
        ),
    )(q, k, v, x2)


def _reference(x2, q, k, v):
    d = q.shape[-1]
    qk = (q @ k.T) / math.sqrt(d)
    qk = qk[None, :, :] + x2
    attn = jax.nn.softmax(qk, axis=-1)
    out = jnp.einsum("bmn,nd->bmd", attn, v)
    return qk, attn, out


if __name__ == "__main__":
    # Consistent, lane-dense small shapes (see header comment).
    B, M, N, D, Dv = 2, 256, 128, 128, 128

    key = jax.random.PRNGKey(0)
    kq, kk, kv, kx1, kx2 = jax.random.split(key, 5)

    # deterministic "parameters" (module __init__ used torch.randn)
    q = jax.random.normal(kq, (M, D), dtype=jnp.float32)
    k = jax.random.normal(kk, (N, D), dtype=jnp.float32)
    v = jax.random.normal(kv, (N, Dv), dtype=jnp.float32)

    # inputs
    x1 = jax.random.normal(kx1, (B, M, N), dtype=jnp.float32)  # unused
    x2 = jax.random.normal(kx2, (B, M, N), dtype=jnp.float32)

    qk_out, attn_out, out = jax.block_until_ready(model_forward(x1, x2, q, k, v))

    # Sanity check against a plain-JAX f32 reference.  Tolerances are much
    # tighter than before since both matmuls are now f32 on the MXU and the
    # softmax uses an exact divide.
    qk_ref, attn_ref, out_ref = _reference(x2, q, k, v)
    assert jnp.allclose(qk_out, qk_ref, atol=1e-2, rtol=1e-2)
    assert jnp.allclose(attn_out, attn_ref, atol=1e-3, rtol=1e-3)
    assert jnp.allclose(out, out_ref, atol=1e-2, rtol=1e-2)

    print("KERNEL_OK")
</pallas_src>

<mosaic_0001>
module attributes {stable_mosaic.version = 11 : i64} {
  func.func @_sdpa_kernel(%arg0: i32, %arg1: i32, %arg2: memref<256x128xf32, #tpu.memory_space<vmem>>, %arg3: memref<128x128xf32, #tpu.memory_space<vmem>>, %arg4: memref<128x128xf32, #tpu.memory_space<vmem>>, %arg5: memref<1x256x128xf32, #tpu.memory_space<vmem>>, %arg6: memref<1x256x128xf32, #tpu.memory_space<vmem>>, %arg7: memref<1x256x128xf32, #tpu.memory_space<vmem>>, %arg8: memref<1x256x128xf32, #tpu.memory_space<vmem>>) attributes {dimension_semantics = [#tpu.dimension_semantics<parallel>, #tpu.dimension_semantics<parallel>], iteration_bounds = array<i64: 2, 1>, scalar_prefetch = 0 : i64, scratch_operands = 0 : i64, tpu.core_type = #tpu.core_type<tc>, window_params = [{transform_indices = @transform_0, window_bounds = array<i64: 256, 128>}, {pipeline_mode = #tpu.pipeline_mode<synchronous>, transform_indices = @transform_1, window_bounds = array<i64: 128, 128>}, {pipeline_mode = #tpu.pipeline_mode<synchronous>, transform_indices = @transform_2, window_bounds = array<i64: 128, 128>}, {transform_indices = @transform_3, window_bounds = array<i64: 1, 256, 128>}, {transform_indices = @transform_4, window_bounds = array<i64: 1, 256, 128>}, {transform_indices = @transform_5, window_bounds = array<i64: 1, 256, 128>}, {transform_indices = @transform_6, window_bounds = array<i64: 1, 256, 128>}]} {
    %c0 = arith.constant 0 : index
    %c0_0 = arith.constant 0 : index
    %0 = vector.load %arg2[%c0, %c0_0] : memref<256x128xf32, #tpu.memory_space<vmem>>, vector<256x128xf32>
    %cst = arith.constant 0.0883883461 : f32
    %1 = vector.broadcast %cst : f32 to vector<256x128xf32>
    %2 = arith.mulf %0, %1 : vector<256x128xf32>
    %c0_1 = arith.constant 0 : index
    %c0_2 = arith.constant 0 : index
    %3 = vector.load %arg3[%c0_1, %c0_2] : memref<128x128xf32, #tpu.memory_space<vmem>>, vector<128x128xf32>
    "tpu.trace_start"() <{level = 10 : i32, message = "md,nd->mn"}> : () -> ()
    %cst_3 = arith.constant dense<0.000000e+00> : vector<256x128xf32>
    %4 = tpu.matmul %2, %3, %cst_3 {dimension_numbers = #tpu.dot_dimension_numbers<[1], [1], [0], [0], [0, 0, 1, 0], [], []>} : vector<256x128xf32>, vector<128x128xf32>, vector<256x128xf32> -> vector<256x128xf32>
    "tpu.trace_stop"() : () -> ()
    %c0_4 = arith.constant 0 : index
    %c0_5 = arith.constant 0 : index
    %c0_6 = arith.constant 0 : index
    %5 = vector.load %arg5[%c0_4, %c0_5, %c0_6] : memref<1x256x128xf32, #tpu.memory_space<vmem>>, vector<1x256x128xf32>
    %6 = vector.shape_cast %5 : vector<1x256x128xf32> to vector<256x128xf32>
    %7 = arith.addf %4, %6 : vector<256x128xf32>
    %c0_7 = arith.constant 0 : index
    %c0_8 = arith.constant 0 : index
    %c0_9 = arith.constant 0 : index
    %8 = vector.load %arg6[%c0_7, %c0_8, %c0_9] : memref<1x256x128xf32, #tpu.memory_space<vmem>>, vector<1x256x128xf32>
    %9 = vector.shape_cast %8 : vector<1x256x128xf32> to vector<256x128xf32>
    %10 = vector.shape_cast %7 : vector<256x128xf32> to vector<1x256x128xf32>
    tpu.vector_store %arg6[%c0_7, %c0_8, %c0_9], %10 {strides = array<i32>} : memref<1x256x128xf32, #tpu.memory_space<vmem>>, vector<1x256x128xf32>,
    %cst_10 = arith.constant dense<0xFF800000> : vector<256xf32>
    %11 = vector.multi_reduction <maximumf>, %7, %cst_10 [1] : vector<256x128xf32> to vector<256xf32>
    %12 = vector.shape_cast %11 : vector<256xf32> to vector<256x1xf32>
    %13 = vector.broadcast %12 : vector<256x1xf32> to vector<256x128xf32>
    %14 = arith.subf %7, %13 : vector<256x128xf32>
    %15 = math.exp %14 : vector<256x128xf32>
    %cst_11 = arith.constant dense<0.000000e+00> : vector<256xf32>
    %16 = vector.multi_reduction <add>, %15, %cst_11 [1] : vector<256x128xf32> to vector<256xf32>
    %17 = vector.shape_cast %16 : vector<256xf32> to vector<256x1xf32>
    %18 = vector.broadcast %17 : vector<256x1xf32> to vector<256x128xf32>
    %19 = arith.divf %15, %18 : vector<256x128xf32>
    %c0_12 = arith.constant 0 : index
    %c0_13 = arith.constant 0 : index
    %c0_14 = arith.constant 0 : index
    %20 = vector.load %arg7[%c0_12, %c0_13, %c0_14] : memref<1x256x128xf32, #tpu.memory_space<vmem>>, vector<1x256x128xf32>
    %21 = vector.shape_cast %20 : vector<1x256x128xf32> to vector<256x128xf32>
    %22 = vector.shape_cast %19 : vector<256x128xf32> to vector<1x256x128xf32>
    tpu.vector_store %arg7[%c0_12, %c0_13, %c0_14], %22 {strides = array<i32>} : memref<1x256x128xf32, #tpu.memory_space<vmem>>, vector<1x256x128xf32>,
    %c0_15 = arith.constant 0 : index
    %c0_16 = arith.constant 0 : index
    %23 = vector.load %arg4[%c0_15, %c0_16] : memref<128x128xf32, #tpu.memory_space<vmem>>, vector<128x128xf32>
    %cst_17 = arith.constant dense<0.000000e+00> : vector<256x128xf32>
    %24 = tpu.matmul %19, %23, %cst_17 {dimension_numbers = #tpu.dot_dimension_numbers<[1], [0], [0], [1], [0, 0, 1, 1], [], []>} : vector<256x128xf32>, vector<128x128xf32>, vector<256x128xf32> -> vector<256x128xf32>
    %c0_18 = arith.constant 0 : index
    %c0_19 = arith.constant 0 : index
    %c0_20 = arith.constant 0 : index
    %25 = vector.load %arg8[%c0_18, %c0_19, %c0_20] : memref<1x256x128xf32, #tpu.memory_space<vmem>>, vector<1x256x128xf32>
    %26 = vector.shape_cast %25 : vector<1x256x128xf32> to vector<256x128xf32>
    %27 = vector.shape_cast %24 : vector<256x128xf32> to vector<1x256x128xf32>
    tpu.vector_store %arg8[%c0_18, %c0_19, %c0_20], %27 {strides = array<i32>} : memref<1x256x128xf32, #tpu.memory_space<vmem>>, vector<1x256x128xf32>,
    return
  }
  func.func @transform_0(%arg0: i32, %arg1: i32) -> (i32, i32) {
    %c0_i32 = arith.constant 0 : i32
    %c0_i32_0 = arith.constant 0 : i32
    return %arg1, %c0_i32 : i32, i32
  }
  func.func @transform_1(%arg0: i32, %arg1: i32) -> (i32, i32) {
    %c0_i32 = arith.constant 0 : i32
    %c0_i32_0 = arith.constant 0 : i32
    %c0_i32_1 = arith.constant 0 : i32
    return %c0_i32, %c0_i32_0 : i32, i32
  }
  func.func @transform_2(%arg0: i32, %arg1: i32) -> (i32, i32) {
    %c0_i32 = arith.constant 0 : i32
    %c0_i32_0 = arith.constant 0 : i32
    %c0_i32_1 = arith.constant 0 : i32
    return %c0_i32, %c0_i32_0 : i32, i32
  }
  func.func @transform_3(%arg0: i32, %arg1: i32) -> (i32, i32, i32) {
    %c0_i32 = arith.constant 0 : i32
    %c0_i32_0 = arith.constant 0 : i32
    return %arg0, %arg1, %c0_i32 : i32, i32, i32
  }
  func.func @transform_4(%arg0: i32, %arg1: i32) -> (i32, i32, i32) {
    %c0_i32 = arith.constant 0 : i32
    %c0_i32_0 = arith.constant 0 : i32
    return %arg0, %arg1, %c0_i32 : i32, i32, i32
  }
  func.func @transform_5(%arg0: i32, %arg1: i32) -> (i32, i32, i32) {
    %c0_i32 = arith.constant 0 : i32
    %c0_i32_0 = arith.constant 0 : i32
    return %arg0, %arg1, %c0_i32 : i32, i32, i32
  }
  func.func @transform_6(%arg0: i32, %arg1: i32) -> (i32, i32, i32) {
    %c0_i32 = arith.constant 0 : i32
    %c0_i32_0 = arith.constant 0 : i32
    return %arg0, %arg1, %c0_i32 : i32, i32, i32
  }
}

</mosaic_0001>

<llo_original>
// kernel: tpu_custom_call.1
$region0: #{tpu_custom_call.1}
  #allocation0 [shape = 'u32[]', space=smem, size = 0x4, offset = 0x4, fixed_abs, tag = 'smem constant byte address 0x4 - core index']
  #allocation1 [shape = 'u32[144,128]{1,0:T(1,128)}', space=vmem, size = 0x12000, scoped, tag = 'internal scratch']
  %s0 = inlined_call_operand.hbm [shape: f32[256,128], index: 0, kind: input, shape index: {}]
  %s1 = inlined_call_operand.hbm [shape: f32[128,128], index: 1, kind: input, shape index: {}]
  %s2 = inlined_call_operand.hbm [shape: f32[128,128], index: 2, kind: input, shape index: {}]
  %s3 = inlined_call_operand.hbm [shape: f32[2,256,128], index: 3, kind: input, shape index: {}]
  %s4 = inlined_call_operand.hbm [shape: f32[2,256,128], index: 4, kind: output, shape index: {0}]
  %s5 = inlined_call_operand.hbm [shape: f32[2,256,128], index: 5, kind: output, shape index: {1}]
  %s6 = inlined_call_operand.hbm [shape: f32[2,256,128], index: 6, kind: output, shape index: {2}]
  %7 = xla_tuple %s4, %s5, %s6
  %s8 = sld [smem:[#allocation0]]
  $region81: #{tpu_custom_call.1} parent=0
    _
  %s10 = ssub.s32 1, %s8
  %s11 = scalar_select 0, %s10, %s8
  $region1: #{tpu_custom_call.1} parent=0
    #allocation2 [shape = 'u8[131072]{0}', space=vmem, size = 0x20000, scoped, tag = 'input window, operand 0, single buffered']
    #allocation3 [shape = 's32[2]{0}', space=sflag, size = 0x8, scoped, tag = 'scoped memory for tpu_custom_call.1']
    #allocation4 [shape = 's32[2]{0}', space=sflag, size = 0x8, scoped, tag = 'scoped memory for tpu_custom_call.1']
    #allocation5 [shape = 'u8[65536]{0}', space=vmem, size = 0x10000, scoped, tag = 'input window, operand 1, single buffered']
    #allocation6 [shape = 's32[1]{0}', space=sflag, size = 0x4, scoped, tag = 'scoped memory for tpu_custom_call.1']
    #allocation7 [shape = 'u8[65536]{0}', space=vmem, size = 0x10000, scoped, tag = 'input window, operand 2, single buffered']
    #allocation8 [shape = 'u8[262144]{0}', space=vmem, size = 0x40000, scoped, tag = 'input window, operand 3']
    #allocation9 [shape = 's32[2]{0}', space=sflag, size = 0x8, scoped, tag = 'scoped memory for tpu_custom_call.1']
    #allocation10 [shape = 'u8[262144]{0}', space=vmem, size = 0x40000, scoped, tag = 'output window, operand 0']
    #allocation11 [shape = 'u8[262144]{0}', space=vmem, size = 0x40000, scoped, tag = 'output window, operand 1']
    #allocation12 [shape = 's32[2]{0}', space=sflag, size = 0x8, scoped, tag = 'scoped memory for tpu_custom_call.1']
    #allocation13 [shape = 'u8[262144]{0}', space=vmem, size = 0x40000, scoped, tag = 'output window, operand 2']
    %12 = vsyncpa [#allocation3], 0
    %13 = vsyncpa [#allocation6], 0
    %14 = vsyncpa [#allocation9], 0
    %s15 = scalar_lea.sflag [#allocation9], 1
    %16 = vsyncpa %s15, 0
    %17 = vsyncpa [#allocation4], 0
    %s18 = scalar_lea.sflag [#allocation4], 1
    %19 = vsyncpa %s18, 0
    %20 = vsyncpa [#allocation12], 0
    %s21 = scalar_lea.sflag [#allocation12], 1
    %22 = vsyncpa %s21, 0
    loop: start=0, step=1, limit=4
    $region2: #{tpu_custom_call.1} parent=1 // loop_pre_header
      _
    $region3: #{tpu_custom_call.1} parent=1 // loop_header
      %s24 = sphi 0, %s28
      %p25 = scmp.ge.s32.totalorder %s24, 4
      %s31 = sphi 0, %s43
      %s32 = sphi 0, %s39
      %s33 = sphi 0, %s31
      %s34 = sphi 0, %s32
      %s35 = sphi 0, %s33
      %s36 = sphi 0, %s34
      %s46 = sphi 0, %s48
      %s49 = sphi 0, %s46
      %s50 = sphi 0, %s49
      %s66 = sphi 0, %s50
      %s70 = sphi 0, %s70
      %s72 = sphi 0, %s70
      %s73 = sphi 0, %s72
      %s87 = sphi 0, %s73
      %s91 = sphi 0, %s91
      %s93 = sphi 0, %s91
      %s94 = sphi 0, %s93
      %s108 = sphi 0, %s94
      %s116 = sphi 0, %s118
      %s119 = sphi 0, %s116
      %s120 = sphi 0, %s119
      %s136 = sphi 0, %s120
      %s144 = sphi 0, %s146
      %s147 = sphi 0, %s144
      %s148 = sphi 0, %s147
      %s164 = sphi 0, %s148
      %s172 = sphi 0, %s174
      %s175 = sphi 0, %s172
      %s176 = sphi 0, %s175
      %s192 = sphi 0, %s176
      %s200 = sphi 0, %s202
      %s203 = sphi 0, %s200
      %s204 = sphi 0, %s203
      %s220 = sphi 0, %s204
    $region4: #{tpu_custom_call.1} parent=1 // loop_header_branch
      %27 = sbr.rel (%p25) target = $region8
    $region5: #{tpu_custom_call.1} parent=1 // loop_body
      %s29 = ssub.s32 %s24, 1
      %s30 = ssub.s32 %s24, 2
      %s37 = sadd.s32 1, %s32
      %p38 = scmp.ge.s32.totalorder %s37, 1
      %s39 = scalar_select %p38, 0, %s37
      %s40 = sadd.s32 1, %s31
      %s41 = scalar_select %p38, %s40, %s31
      %p42 = scmp.ge.s32.totalorder %s41, 2
      %s43 = scalar_select %p42, 0, %s41
      %s44 = ssub.s32 %s32, %s39
      %p45 = scmp.eq.s32.totalorder %s44, 0
      %s47 = sadd.s32 %s46, 1
      %s48 = scalar_select %p45, %s46, %s47
      %p51 = pneg %p45
      %p52 = scmp.eq.s32.totalorder %s24, 1
      %p53 = por %p51, %p52
      %p54 = scmp.ne.s32.totalorder %s46, %s49
      %p55 = scmp.eq.s32.totalorder %s24, 0
      %p56 = por %p54, %p55
      %p57 = scmp.ne.s32.totalorder %s46, %s49
      %p58 = scmp.eq.s32.totalorder %s29, 1
      %p59 = por %p57, %p58
      %p60 = scmp.ne.s32.totalorder %s49, %s50
      %p61 = scmp.eq.s32.totalorder %s29, 0
      %p62 = por %p60, %p61
      %p63 = scmp.ne.s32.totalorder %s49, %s50
      %p64 = scmp.eq.s32.totalorder %s30, 1
      %p65 = por %p63, %p64
      %p67 = scmp.ne.s32.totalorder %s50, %s66
      %p68 = scmp.eq.s32.totalorder %s30, 0
      %p69 = por %p67, %p68
      %s71 = sadd.s32 %s70, 1
      %p74 = scmp.eq.s32.totalorder %s24, 1
      %p75 = scmp.ne.s32.totalorder %s70, %s72
      %p76 = scmp.eq.s32.totalorder %s24, 0
      %p77 = por %p75, %p76
      %p78 = scmp.ne.s32.totalorder %s70, %s72
      %p79 = scmp.eq.s32.totalorder %s29, 1
      %p80 = por %p78, %p79
      %p81 = scmp.ne.s32.totalorder %s72, %s73
      %p82 = scmp.eq.s32.totalorder %s29, 0
      %p83 = por %p81, %p82
      %p84 = scmp.ne.s32.totalorder %s72, %s73
      %p85 = scmp.eq.s32.totalorder %s30, 1
      %p86 = por %p84, %p85
      %p88 = scmp.ne.s32.totalorder %s73, %s87
      %p89 = scmp.eq.s32.totalorder %s30, 0
      %p90 = por %p88, %p89
      %s92 = sadd.s32 %s91, 1
      %p95 = scmp.eq.s32.totalorder %s24, 1
      %p96 = scmp.ne.s32.totalorder %s91, %s93
      %p97 = scmp.eq.s32.totalorder %s24, 0
      %p98 = por %p96, %p97
      %p99 = scmp.ne.s32.totalorder %s91, %s93
      %p100 = scmp.eq.s32.totalorder %s29, 1
      %p101 = por %p99, %p100
      %p102 = scmp.ne.s32.totalorder %s93, %s94
      %p103 = scmp.eq.s32.totalorder %s29, 0
      %p104 = por %p102, %p103
      %p105 = scmp.ne.s32.totalorder %s93, %s94
      %p106 = scmp.eq.s32.totalorder %s30, 1
      %p107 = por %p105, %p106
      %p109 = scmp.ne.s32.totalorder %s94, %s108
      %p110 = scmp.eq.s32.totalorder %s30, 0
      %p111 = por %p109, %p110
      %s112 = ssub.s32 %s31, %s43
      %s113 = ssub.s32 %s32, %s39
      %s114 = sor.u32 %s112, %s113
      %p115 = scmp.eq.s32.totalorder %s114, 0
      %s117 = sadd.s32 %s116, 1
      %s118 = scalar_select %p115, %s116, %s117
      %p121 = pneg %p115
      %p122 = scmp.eq.s32.totalorder %s24, 1
      %p123 = por %p121, %p122
      %p124 = scmp.ne.s32.totalorder %s116, %s119
      %p125 = scmp.eq.s32.totalorder %s24, 0
      %p126 = por %p124, %p125
      %p127 = scmp.ne.s32.totalorder %s116, %s119
      %p128 = scmp.eq.s32.totalorder %s29, 1
      %p129 = por %p127, %p128
      %p130 = scmp.ne.s32.totalorder %s119, %s120
      %p131 = scmp.eq.s32.totalorder %s29, 0
      %p132 = por %p130, %p131
      %p133 = scmp.ne.s32.totalorder %s119, %s120
      %p134 = scmp.eq.s32.totalorder %s30, 1
      %p135 = por %p133, %p134
      %p137 = scmp.ne.s32.totalorder %s120, %s136
      %p138 = scmp.eq.s32.totalorder %s30, 0
      %p139 = por %p137, %p138
      %s140 = ssub.s32 %s31, %s43
      %s141 = ssub.s32 %s32, %s39
      %s142 = sor.u32 %s140, %s141
      %p143 = scmp.eq.s32.totalorder %s142, 0
      %s145 = sadd.s32 %s144, 1
      %s146 = scalar_select %p143, %s144, %s145
      %p149 = pneg %p143
      %p150 = scmp.eq.s32.totalorder %s24, 1
      %p151 = por %p149, %p150
      %p152 = scmp.ne.s32.totalorder %s144, %s147
      %p153 = scmp.eq.s32.totalorder %s24, 0
      %p154 = por %p152, %p153
      %p155 = scmp.ne.s32.totalorder %s144, %s147
      %p156 = scmp.eq.s32.totalorder %s29, 1
      %p157 = por %p155, %p156
      %p158 = scmp.ne.s32.totalorder %s147, %s148
      %p159 = scmp.eq.s32.totalorder %s29, 0
      %p160 = por %p158, %p159
      %p161 = scmp.ne.s32.totalorder %s147, %s148
      %p162 = scmp.eq.s32.totalorder %s30, 1
      %p163 = por %p161, %p162
      %p165 = scmp.ne.s32.totalorder %s148, %s164
      %p166 = scmp.eq.s32.totalorder %s30, 0
      %p167 = por %p165, %p166
      %s168 = ssub.s32 %s31, %s43
      %s169 = ssub.s32 %s32, %s39
      %s170 = sor.u32 %s168, %s169
      %p171 = scmp.eq.s32.totalorder %s170, 0
      %s173 = sadd.s32 %s172, 1
      %s174 = scalar_select %p171, %s172, %s173
      %p177 = pneg %p171
      %p178 = scmp.eq.s32.totalorder %s24, 1
      %p179 = por %p177, %p178
      %p180 = scmp.ne.s32.totalorder %s172, %s175
      %p181 = scmp.eq.s32.totalorder %s24, 0
      %p182 = por %p180, %p181
      %p183 = scmp.ne.s32.totalorder %s172, %s175
      %p184 = scmp.eq.s32.totalorder %s29, 1
      %p185 = por %p183, %p184
      %p186 = scmp.ne.s32.totalorder %s175, %s176
      %p187 = scmp.eq.s32.totalorder %s29, 0
      %p188 = por %p186, %p187
      %p189 = scmp.ne.s32.totalorder %s175, %s176
      %p190 = scmp.eq.s32.totalorder %s30, 1
      %p191 = por %p189, %p190
      %p193 = scmp.ne.s32.totalorder %s176, %s192
      %p194 = scmp.eq.s32.totalorder %s30, 0
      %p195 = por %p193, %p194
      %s196 = ssub.s32 %s31, %s43
      %s197 = ssub.s32 %s32, %s39
      %s198 = sor.u32 %s196, %s197
      %p199 = scmp.eq.s32.totalorder %s198, 0
      %s201 = sadd.s32 %s200, 1
      %s202 = scalar_select %p199, %s200, %s201
      %p205 = pneg %p199
      %p206 = scmp.eq.s32.totalorder %s24, 1
      %p207 = por %p205, %p206
      %p208 = scmp.ne.s32.totalorder %s200, %s203
      %p209 = scmp.eq.s32.totalorder %s24, 0
      %p210 = por %p208, %p209
      %p211 = scmp.ne.s32.totalorder %s200, %s203
      %p212 = scmp.eq.s32.totalorder %s29, 1
      %p213 = por %p211, %p212
      %p214 = scmp.ne.s32.totalorder %s203, %s204
      %p215 = scmp.eq.s32.totalorder %s29, 0
      %p216 = por %p214, %p215
      %p217 = scmp.ne.s32.totalorder %s203, %s204
      %p218 = scmp.eq.s32.totalorder %s30, 1
      %p219 = por %p217, %p218
      %p221 = scmp.ne.s32.totalorder %s204, %s220
      %p222 = scmp.eq.s32.totalorder %s30, 0
      %p223 = por %p221, %p222
      %p224 = scmp.le.s32.totalorder 1, %s24
      %p225 = scmp.lt.s32.totalorder %s24, 3
      %p226 = pnand %p224, %p225
      %p227 = pneg %p226
      // Predicated region
      $region9: #{tpu_custom_call.1} parent=5 // pred_check
        _
      $region10: #{tpu_custom_call.1} parent=5 // pred_check_branch
        %229 = sbr.rel (%p226) target = $region12
      $region11: #{tpu_custom_call.1} parent=5 // pred_region
        %s230 = ssub.s32 %s24, 1
        // Predicated region
        $region13: #{tpu_custom_call.1} parent=11 // pred_check
          %p231 = pneg %p62
        $region14: #{tpu_custom_call.1} parent=11 // pred_check_branch
          %233 = sbr.rel (%p231) target = $region16
        $region15: #{tpu_custom_call.1} parent=11 // pred_region
          %s234 = smul.u32 32, %s34
          %s236 = ssub.s32 4096, 4096
          %237 = vsyncadd [#allocation3], %s236
          %s238 = smul.addr %s234, 128
          %s239 = scalar_lea.hbm %s0, %s238
          %s240 = sshll.u32 [#allocation2], 4
          %s241 = int_to_ptr.vmem [resolvable:$true] %s240
          %246 = dma.hbm_to_vmem [thread:$0]  %s239, 4096, %s241, [#allocation3], 128, 128, 8
        $region16: #{tpu_custom_call.1} parent=11 // pred_fallthru
          _
        // Predicated region
        $region17: #{tpu_custom_call.1} parent=11 // pred_check
          %p247 = pneg %p83
        $region18: #{tpu_custom_call.1} parent=11 // pred_check_branch
          %249 = sbr.rel (%p247) target = $region20
        $region19: #{tpu_custom_call.1} parent=11 // pred_region
          %s251 = ssub.s32 2048, 2048
          %252 = vsyncadd [#allocation6], %s251
          %s253 = sshll.u32 [#allocation5], 4
          %s254 = int_to_ptr.vmem [resolvable:$true] %s253
          %259 = dma.hbm_to_vmem [thread:$0]  %s1, 2048, %s254, [#allocation6], 128, 128, 8
        $region20: #{tpu_custom_call.1} parent=11 // pred_fallthru
          _
        // Predicated region
        $region21: #{tpu_custom_call.1} parent=11 // pred_check
          %p260 = pneg %p104
        $region22: #{tpu_custom_call.1} parent=11 // pred_check_branch
          %262 = sbr.rel (%p260) target = $region24
        $region23: #{tpu_custom_call.1} parent=11 // pred_region
          %s264 = ssub.s32 2048, 2048
          %265 = vsyncadd [#allocation6], %s264
          %s266 = sshll.u32 [#allocation7], 4
          %s267 = int_to_ptr.vmem [resolvable:$true] %s266
          %272 = dma.hbm_to_vmem [thread:$0]  %s2, 2048, %s267, [#allocation6], 128, 128, 8
        $region24: #{tpu_custom_call.1} parent=11 // pred_fallthru
          _
      $region12: #{tpu_custom_call.1} parent=5 // pred_fallthru
        _
      %p273 = scmp.lt.s32.totalorder %s24, 2
      // Predicated region
      $region25: #{tpu_custom_call.1} parent=5 // pred_check
        %p274 = pneg %p273
      $region26: #{tpu_custom_call.1} parent=5 // pred_check_branch
        %276 = sbr.rel (%p274) target = $region28
      $region27: #{tpu_custom_call.1} parent=5 // pred_region
        // Predicated region
        $region29: #{tpu_custom_call.1} parent=27 // pred_check
          %p277 = pneg %p126
        $region30: #{tpu_custom_call.1} parent=27 // pred_check_branch
          %279 = sbr.rel (%p277) target = $region32
        $region31: #{tpu_custom_call.1} parent=27 // pred_region
          %s280 = sand.u32 %s116, 1
          %s281 = scalar_lea.sflag [#allocation9], %s280
          %s282 = sand.u32 %s116, 1
          %s283 = smul.addr %s282, 256
          %s284 = scalar_lea.vmem [#allocation8], %s283
          %s285 = smul.u32 32, %s32
          %s287 = ssub.s32 4096, 4096
          %288 = vsyncadd %s281, %s287
          %s289 = smul.addr %s31, 32
          %s290 = sadd.s32 %s285, %s289
          %s291 = smul.addr %s290, 128
          %s292 = scalar_lea.hbm %s3, %s291
          %s293 = sshll.u32 %s284, 4
          %s294 = int_to_ptr.vmem [resolvable:$true] %s293
          %299 = dma.hbm_to_vmem [thread:$0]  %s292, 4096, %s294, %s281, 128, 128, 8
        $region32: #{tpu_custom_call.1} parent=27 // pred_fallthru
          _
      $region28: #{tpu_custom_call.1} parent=5 // pred_fallthru
        _
      %p300 = scmp.le.s32.totalorder 1, %s24
      %p301 = scmp.lt.s32.totalorder %s24, 3
      %p302 = pnand %p300, %p301
      %p303 = pneg %p302
      // Predicated region
      $region33: #{tpu_custom_call.1} parent=5 // pred_check
        _
      $region34: #{tpu_custom_call.1} parent=5 // pred_check_branch
        %305 = sbr.rel (%p302) target = $region36
      $region35: #{tpu_custom_call.1} parent=5 // pred_region
        %s306 = ssub.s32 %s24, 1
        // Predicated region
        $region37: #{tpu_custom_call.1} parent=35 // pred_check
          %p307 = pneg %p62
        $region38: #{tpu_custom_call.1} parent=35 // pred_check_branch
          %309 = sbr.rel (%p307) target = $region40
        $region39: #{tpu_custom_call.1} parent=35 // pred_region
          %310 = dma.done [#allocation3], 4096
        $region40: #{tpu_custom_call.1} parent=35 // pred_fallthru
          _
        // Predicated region
        $region41: #{tpu_custom_call.1} parent=35 // pred_check
          %p311 = pneg %p83
        $region42: #{tpu_custom_call.1} parent=35 // pred_check_branch
          %313 = sbr.rel (%p311) target = $region44
        $region43: #{tpu_custom_call.1} parent=35 // pred_region
          %314 = dma.done [#allocation6], 2048
        $region44: #{tpu_custom_call.1} parent=35 // pred_fallthru
          _
        // Predicated region
        $region45: #{tpu_custom_call.1} parent=35 // pred_check
          %p315 = pneg %p104
        $region46: #{tpu_custom_call.1} parent=35 // pred_check_branch
          %317 = sbr.rel (%p315) target = $region48
        $region47: #{tpu_custom_call.1} parent=35 // pred_region
          %318 = dma.done [#allocation6], 2048
        $region48: #{tpu_custom_call.1} parent=35 // pred_fallthru
          _
        %s319 = sand.u32 %s119, 1
        %s320 = scalar_lea.sflag [#allocation9], %s319
        %s321 = sand.u32 %s119, 1
        %s322 = smul.addr %s321, 256
        %s323 = scalar_lea.vmem [#allocation8], %s322
        // Predicated region
        $region49: #{tpu_custom_call.1} parent=35 // pred_check
          %p324 = pneg %p132
        $region50: #{tpu_custom_call.1} parent=35 // pred_check_branch
          %326 = sbr.rel (%p324) target = $region52
        $region51: #{tpu_custom_call.1} parent=35 // pred_region
          %327 = dma.done %s320, 4096
        $region52: #{tpu_custom_call.1} parent=35 // pred_fallthru
          _
        %p328 = pneg %p62
        %p329 = pneg %p59
        %p330 = pneg %p83
        %p331 = pneg %p80
        %p332 = pneg %p104
        %p333 = pneg %p101
        %s334 = sand.u32 %s119, 1
        %s335 = scalar_lea.sflag [#allocation9], %s334
        %s336 = sand.u32 %s119, 1
        %s337 = smul.addr %s336, 256
        %s338 = scalar_lea.vmem [#allocation8], %s337
        %p339 = pneg %p132
        %p340 = pneg %p129
        %p341 = pneg %p160
        %p342 = pneg %p157
        %s343 = sand.u32 %s147, 1
        %s344 = scalar_lea.sflag [#allocation4], %s343
        %s345 = sand.u32 %s147, 1
        %s346 = smul.addr %s345, 256
        %s347 = scalar_lea.vmem [#allocation10], %s346
        %p348 = pneg %p188
        %p349 = pneg %p185
        %s350 = sand.u32 %s29, 1
        %s351 = scalar_lea.sflag [#allocation12], %s350
        %s352 = sand.u32 %s175, 1
        %s353 = smul.addr %s352, 256
        %s354 = scalar_lea.vmem [#allocation11], %s353
        %p355 = pneg %p216
        %p356 = pneg %p213
        %s357 = sand.u32 %s29, 1
        %s358 = scalar_lea.sflag [#allocation12], %s357
        %s359 = sand.u32 %s203, 1
        %s360 = smul.addr %s359, 256
        %s361 = scalar_lea.vmem [#allocation13], %s360
        %s362 = smul.u32 32, %s34
        %s363 = smul.u32 32, %s34
        %s364 = smul.u32 32, %s34
        %s365 = smul.u32 32, %s34
        %s366 = smul.u32 32, %s34
        %v367 = vld [vmem:[#allocation2] sm:$0xff]
        %v368 = vld [vmem:[#allocation2 + $0x8] sm:$0xff]
        %v369 = vld [vmem:[#allocation2 + $0x10] sm:$0xff]
        %v370 = vld [vmem:[#allocation2 + $0x18] sm:$0xff]
        %v371 = vld [vmem:[#allocation2 + $0x20] sm:$0xff]
        %v372 = vld [vmem:[#allocation2 + $0x28] sm:$0xff]
        %v373 = vld [vmem:[#allocation2 + $0x30] sm:$0xff]
        %v374 = vld [vmem:[#allocation2 + $0x38] sm:$0xff]
        %v375 = vld [vmem:[#allocation2 + $0x40] sm:$0xff]
        %v376 = vld [vmem:[#allocation2 + $0x48] sm:$0xff]
        %v377 = vld [vmem:[#allocation2 + $0x50] sm:$0xff]
        %v378 = vld [vmem:[#allocation2 + $0x58] sm:$0xff]
        %v379 = vld [vmem:[#allocation2 + $0x60] sm:$0xff]
        %v380 = vld [vmem:[#allocation2 + $0x68] sm:$0xff]
        %v381 = vld [vmem:[#allocation2 + $0x70] sm:$0xff]
        %v382 = vld [vmem:[#allocation2 + $0x78] sm:$0xff]
        %v383 = vld [vmem:[#allocation2 + $0x80] sm:$0xff]
        %v384 = vld [vmem:[#allocation2 + $0x88] sm:$0xff]
        %v385 = vld [vmem:[#allocation2 + $0x90] sm:$0xff]
        %v386 = vld [vmem:[#allocation2 + $0x98] sm:$0xff]
        %v387 = vld [vmem:[#allocation2 + $0xa0] sm:$0xff]
        %v388 = vld [vmem:[#allocation2 + $0xa8] sm:$0xff]
        %v389 = vld [vmem:[#allocation2 + $0xb0] sm:$0xff]
        %v390 = vld [vmem:[#allocation2 + $0xb8] sm:$0xff]
        %v391 = vld [vmem:[#allocation2 + $0xc0] sm:$0xff]
        %v392 = vld [vmem:[#allocation2 + $0xc8] sm:$0xff]
        %v393 = vld [vmem:[#allocation2 + $0xd0] sm:$0xff]
        %v394 = vld [vmem:[#allocation2 + $0xd8] sm:$0xff]
        %v395 = vld [vmem:[#allocation2 + $0xe0] sm:$0xff]
        %v396 = vld [vmem:[#allocation2 + $0xe8] sm:$0xff]
        %v397 = vld [vmem:[#allocation2 + $0xf0] sm:$0xff]
        %v398 = vld [vmem:[#allocation2 + $0xf8] sm:$0xff]
        %v399 = vmul.f32 %v367, 0.088388346
        %v400 = vmul.f32 %v368, 0.088388346
        %v401 = vmul.f32 %v369, 0.088388346
        %v402 = vmul.f32 %v370, 0.088388346
        %v403 = vmul.f32 %v371, 0.088388346
        %v404 = vmul.f32 %v372, 0.088388346
        %v405 = vmul.f32 %v373, 0.088388346
        %v406 = vmul.f32 %v374, 0.088388346
        %v407 = vmul.f32 %v375, 0.088388346
        %v408 = vmul.f32 %v376, 0.088388346
        %v409 = vmul.f32 %v377, 0.088388346
        %v410 = vmul.f32 %v378, 0.088388346
        %v411 = vmul.f32 %v379, 0.088388346
        %v412 = vmul.f32 %v380, 0.088388346
        %v413 = vmul.f32 %v381, 0.088388346
        %v414 = vmul.f32 %v382, 0.088388346
        %v415 = vmul.f32 %v383, 0.088388346
        %v416 = vmul.f32 %v384, 0.088388346
        %v417 = vmul.f32 %v385, 0.088388346
        %v418 = vmul.f32 %v386, 0.088388346
        %v419 = vmul.f32 %v387, 0.088388346
        %v420 = vmul.f32 %v388, 0.088388346
        %v421 = vmul.f32 %v389, 0.088388346
        %v422 = vmul.f32 %v390, 0.088388346
        %v423 = vmul.f32 %v391, 0.088388346
        %v424 = vmul.f32 %v392, 0.088388346
        %v425 = vmul.f32 %v393, 0.088388346
        %v426 = vmul.f32 %v394, 0.088388346
        %v427 = vmul.f32 %v395, 0.088388346
        %v428 = vmul.f32 %v396, 0.088388346
        %v429 = vmul.f32 %v397, 0.088388346
        %v430 = vmul.f32 %v398, 0.088388346
        %v431 = vld [vmem:[#allocation5] sm:$0xff]
        %v432 = vld [vmem:[#allocation5 + $0x8] sm:$0xff]
        %v433 = vld [vmem:[#allocation5 + $0x10] sm:$0xff]
        %v434 = vld [vmem:[#allocation5 + $0x18] sm:$0xff]
        %v435 = vld [vmem:[#allocation5 + $0x20] sm:$0xff]
        %v436 = vld [vmem:[#allocation5 + $0x28] sm:$0xff]
        %v437 = vld [vmem:[#allocation5 + $0x30] sm:$0xff]
        %v438 = vld [vmem:[#allocation5 + $0x38] sm:$0xff]
        %v439 = vld [vmem:[#allocation5 + $0x40] sm:$0xff]
        %v440 = vld [vmem:[#allocation5 + $0x48] sm:$0xff]
        %v441 = vld [vmem:[#allocation5 + $0x50] sm:$0xff]
        %v442 = vld [vmem:[#allocation5 + $0x58] sm:$0xff]
        %v443 = vld [vmem:[#allocation5 + $0x60] sm:$0xff]
        %v444 = vld [vmem:[#allocation5 + $0x68] sm:$0xff]
        %v445 = vld [vmem:[#allocation5 + $0x70] sm:$0xff]
        %v446 = vld [vmem:[#allocation5 + $0x78] sm:$0xff]
        %v447 = vld [vmem:[%s323] sm:$0xff]
        %v448 = vld [vmem:[%s323 + $0x8] sm:$0xff]
        %v449 = vld [vmem:[%s323 + $0x10] sm:$0xff]
        %v450 = vld [vmem:[%s323 + $0x18] sm:$0xff]
        %v451 = vld [vmem:[%s323 + $0x20] sm:$0xff]
        %v452 = vld [vmem:[%s323 + $0x28] sm:$0xff]
        %v453 = vld [vmem:[%s323 + $0x30] sm:$0xff]
        %v454 = vld [vmem:[%s323 + $0x38] sm:$0xff]
        %v455 = vld [vmem:[%s323 + $0x40] sm:$0xff]
        %v456 = vld [vmem:[%s323 + $0x48] sm:$0xff]
        %v457 = vld [vmem:[%s323 + $0x50] sm:$0xff]
        %v458 = vld [vmem:[%s323 + $0x58] sm:$0xff]
        %v459 = vld [vmem:[%s323 + $0x60] sm:$0xff]
        %v460 = vld [vmem:[%s323 + $0x68] sm:$0xff]
        %v461 = vld [vmem:[%s323 + $0x70] sm:$0xff]
        %v462 = vld [vmem:[%s323 + $0x78] sm:$0xff]
        %v463 = vld [vmem:[%s323 + $0x80] sm:$0xff]
        %v464 = vld [vmem:[%s323 + $0x88] sm:$0xff]
        %v465 = vld [vmem:[%s323 + $0x90] sm:$0xff]
        %v466 = vld [vmem:[%s323 + $0x98] sm:$0xff]
        %v467 = vld [vmem:[%s323 + $0xa0] sm:$0xff]
        %v468 = vld [vmem:[%s323 + $0xa8] sm:$0xff]
        %v469 = vld [vmem:[%s323 + $0xb0] sm:$0xff]
        %v470 = vld [vmem:[%s323 + $0xb8] sm:$0xff]
        %v471 = vld [vmem:[%s323 + $0xc0] sm:$0xff]
        %v472 = vld [vmem:[%s323 + $0xc8] sm:$0xff]
        %v473 = vld [vmem:[%s323 + $0xd0] sm:$0xff]
        %v474 = vld [vmem:[%s323 + $0xd8] sm:$0xff]
        %v475 = vld [vmem:[%s323 + $0xe0] sm:$0xff]
        %v476 = vld [vmem:[%s323 + $0xe8] sm:$0xff]
        %v477 = vld [vmem:[%s323 + $0xf0] sm:$0xff]
        %v478 = vld [vmem:[%s323 + $0xf8] sm:$0xff]
        %479 = vmatprep.subr.mxu0 0.0
        %480 = vmatpush1.xpose.msra.mxu0 %v431
        %481 = vmatprep.subr.mxu0 0.0
        %482 = vmatpush1.xpose.msra.mxu0 %v432
        %483 = vmatprep.subr.mxu0 0.0
        %484 = vmatpush1.xpose.msra.mxu0 %v433
        %485 = vmatprep.subr.mxu0 0.0
        %486 = vmatpush1.xpose.msra.mxu0 %v434
        %487 = vmatprep.subr.mxu0 0.0
        %488 = vmatpush1.xpose.msra.mxu0 %v435
        %489 = vmatprep.subr.mxu0 0.0
        %490 = vmatpush1.xpose.msra.mxu0 %v436
        %491 = vmatprep.subr.mxu0 0.0
        %492 = vmatpush1.xpose.msra.mxu0 %v437
        %493 = vmatprep.subr.mxu0 0.0
        %494 = vmatpush1.xpose.msra.mxu0 %v438
        %495 = vmatprep.subr.mxu0 0.0
        %496 = vmatpush1.xpose.msra.mxu0 %v439
        %497 = vmatprep.subr.mxu0 0.0
        %498 = vmatpush1.xpose.msra.mxu0 %v440
        %499 = vmatprep.subr.mxu0 0.0
        %500 = vmatpush1.xpose.msra.mxu0 %v441
        %501 = vmatprep.subr.mxu0 0.0
        %502 = vmatpush1.xpose.msra.mxu0 %v442
        %503 = vmatprep.subr.mxu0 0.0
        %504 = vmatpush1.xpose.msra.mxu0 %v443
        %505 = vmatprep.subr.mxu0 0.0
        %506 = vmatpush1.xpose.msra.mxu0 %v444
        %507 = vmatprep.subr.mxu0 0.0
        %508 = vmatpush1.xpose.msra.mxu0 %v445
        %509 = vmatprep.subr.mxu0 0.0
        %510 = vmatpush1.xpose.msra.mxu0 %v446
        %511 = vmatprep.subr.mxu0 0.0
        %512 = vmatpush1.xpose.msra.mxu0 0.0
        %513 = vmatprep.subr.mxu0 0.0
        %514 = vmatpush1.xpose.msra.mxu0 0.0
        %515 = vmatprep.subr.mxu0 0.0
        %516 = vmatpush1.xpose.msra.mxu0 0.0
        %517 = vmatprep.subr.mxu0 0.0
        %518 = vmatpush1.xpose.msra.mxu0 0.0
        %519 = vmatprep.subr.mxu0 0.0
        %520 = vmatpush1.xpose.msra.mxu0 0.0
        %521 = vmatprep.subr.mxu0 0.0
        %522 = vmatpush1.xpose.msra.mxu0 0.0
        %523 = vmatprep.subr.mxu0 0.0
        %524 = vmatpush1.xpose.msra.mxu0 0.0
        %525 = vmatprep.subr.mxu0 0.0
        %526 = vmatpush1.xpose.msra.mxu0 0.0
        %527 = vmatprep.subr.mxu0 0.0
        %528 = vmatpush1.xpose.msra.mxu0 0.0
        %529 = vmatprep.subr.mxu0 0.0
        %530 = vmatpush1.xpose.msra.mxu0 0.0
        %531 = vmatprep.subr.mxu0 0.0
        %532 = vmatpush1.xpose.msra.mxu0 0.0
        %533 = vmatprep.subr.mxu0 0.0
        %534 = vmatpush1.xpose.msra.mxu0 0.0
        %535 = vmatprep.subr.mxu0 0.0
        %536 = vmatpush1.xpose.msra.mxu0 0.0
        %537 = vmatprep.subr.mxu0 0.0
        %538 = vmatpush1.xpose.msra.mxu0 0.0
        %539 = vmatprep.subr.mxu0 0.0
        %540 = vmatpush1.xpose.msra.mxu0 0.0
        %541 = vmatprep.subr.mxu0 0.0
        %542 = vmatpush1.xpose.msra.mxu0 0.0
        %543 = vmatprep.mubr.f32.mxu0 0.0
        %544 = vmatmul.mubr.f32.gmra.mrb[0].mxu0 %v399
        %v545 = vpop.f32.mrb[0].mxu0
        %v546 = vadd.f32 %v447, %v545
        %v547 = vpop.f32.mrb[0].mxu0
        %548 = vmatprep.mubr.f32.mxu0 0.0
        %549 = vmatmul.mubr.f32.gmra.mrb[0].mxu0 %v400
        %v550 = vpop.f32.mrb[0].mxu0
        %v551 = vadd.f32 %v448, %v550
        %v552 = vpop.f32.mrb[0].mxu0
        %553 = vmatprep.mubr.f32.mxu0 0.0
        %554 = vmatmul.mubr.f32.gmra.mrb[0].mxu0 %v401
        %v555 = vpop.f32.mrb[0].mxu0
        %v556 = vadd.f32 %v449, %v555
        %v557 = vpop.f32.mrb[0].mxu0
        %558 = vmatprep.mubr.f32.mxu0 0.0
        %559 = vmatmul.mubr.f32.gmra.mrb[0].mxu0 %v402
        %v560 = vpop.f32.mrb[0].mxu0
        %v561 = vadd.f32 %v450, %v560
        %v562 = vpop.f32.mrb[0].mxu0
        %563 = vmatprep.mubr.f32.mxu0 0.0
        %564 = vmatmul.mubr.f32.gmra.mrb[0].mxu0 %v403
        %v565 = vpop.f32.mrb[0].mxu0
        %v566 = vadd.f32 %v451, %v565
        %v567 = vpop.f32.mrb[0].mxu0
        %568 = vmatprep.mubr.f32.mxu0 0.0
        %569 = vmatmul.mubr.f32.gmra.mrb[0].mxu0 %v404
        %v570 = vpop.f32.mrb[0].mxu0
        %v571 = vadd.f32 %v452, %v570
        %v572 = vpop.f32.mrb[0].mxu0
        %573 = vmatprep.mubr.f32.mxu0 0.0
        %574 = vmatmul.mubr.f32.gmra.mrb[0].mxu0 %v405
        %v575 = vpop.f32.mrb[0].mxu0
        %v576 = vadd.f32 %v453, %v575
        %v577 = vpop.f32.mrb[0].mxu0
        %578 = vmatprep.mubr.f32.mxu0 0.0
        %579 = vmatmul.mubr.f32.gmra.mrb[0].mxu0 %v406
        %v580 = vpop.f32.mrb[0].mxu0
        %v581 = vadd.f32 %v454, %v580
        %v582 = vpop.f32.mrb[0].mxu0
        %583 = vmatprep.mubr.f32.mxu0 0.0
        %584 = vmatmul.mubr.f32.gmra.mrb[0].mxu0 %v407
        %v585 = vpop.f32.mrb[0].mxu0
        %v586 = vadd.f32 %v455, %v585
        %v587 = vpop.f32.mrb[0].mxu0
        %588 = vmatprep.mubr.f32.mxu0 0.0
        %589 = vmatmul.mubr.f32.gmra.mrb[0].mxu0 %v408
        %v590 = vpop.f32.mrb[0].mxu0
        %v591 = vadd.f32 %v456, %v590
        %v592 = vpop.f32.mrb[0].mxu0
        %593 = vmatprep.mubr.f32.mxu0 0.0
        %594 = vmatmul.mubr.f32.gmra.mrb[0].mxu0 %v409
        %v595 = vpop.f32.mrb[0].mxu0
        %v596 = vadd.f32 %v457, %v595
        %v597 = vpop.f32.mrb[0].mxu0
        %598 = vmatprep.mubr.f32.mxu0 0.0
        %599 = vmatmul.mubr.f32.gmra.mrb[0].mxu0 %v410
        %v600 = vpop.f32.mrb[0].mxu0
        %v601 = vadd.f32 %v458, %v600
        %v602 = vpop.f32.mrb[0].mxu0
        %603 = vmatprep.mubr.f32.mxu0 0.0
        %604 = vmatmul.mubr.f32.gmra.mrb[0].mxu0 %v411
        %v605 = vpop.f32.mrb[0].mxu0
        %v606 = vadd.f32 %v459, %v605
        %v607 = vpop.f32.mrb[0].mxu0
        %608 = vmatprep.mubr.f32.mxu0 0.0
        %609 = vmatmul.mubr.f32.gmra.mrb[0].mxu0 %v412
        %v610 = vpop.f32.mrb[0].mxu0
        %v611 = vadd.f32 %v460, %v610
        %v612 = vpop.f32.mrb[0].mxu0
        %613 = vmatprep.mubr.f32.mxu0 0.0
        %614 = vmatmul.mubr.f32.gmra.mrb[0].mxu0 %v413
        %v615 = vpop.f32.mrb[0].mxu0
        %v616 = vadd.f32 %v461, %v615
        %v617 = vpop.f32.mrb[0].mxu0
        %618 = vmatprep.mubr.f32.mxu0 0.0
        %619 = vmatmul.mubr.f32.gmra.mrb[0].mxu0 %v414
        %v620 = vpop.f32.mrb[0].mxu0
        %v621 = vadd.f32 %v462, %v620
        %v622 = vpop.f32.mrb[0].mxu0
        %623 = vmatprep.mubr.f32.mxu0 0.0
        %624 = vmatmul.mubr.f32.gmra.mrb[0].mxu0 %v415
        %v625 = vpop.f32.mrb[0].mxu0
        %v626 = vadd.f32 %v463, %v625
        %v627 = vpop.f32.mrb[0].mxu0
        %628 = vmatprep.mubr.f32.mxu0 0.0
        %629 = vmatmul.mubr.f32.gmra.mrb[0].mxu0 %v416
        %v630 = vpop.f32.mrb[0].mxu0
        %v631 = vadd.f32 %v464, %v630
        %v632 = vpop.f32.mrb[0].mxu0
        %633 = vmatprep.mubr.f32.mxu0 0.0
        %634 = vmatmul.mubr.f32.gmra.mrb[0].mxu0 %v417
        %v635 = vpop.f32.mrb[0].mxu0
        %v636 = vadd.f32 %v465, %v635
        %v637 = vpop.f32.mrb[0].mxu0
        %638 = vmatprep.mubr.f32.mxu0 0.0
        %639 = vmatmul.mubr.f32.gmra.mrb[0].mxu0 %v418
        %v640 = vpop.f32.mrb[0].mxu0
        %v641 = vadd.f32 %v466, %v640
        %v642 = vpop.f32.mrb[0].mxu0
        %643 = vmatprep.mubr.f32.mxu0 0.0
        %644 = vmatmul.mubr.f32.gmra.mrb[0].mxu0 %v419
        %v645 = vpop.f32.mrb[0].mxu0
        %v646 = vadd.f32 %v467, %v645
        %v647 = vpop.f32.mrb[0].mxu0
        %648 = vmatprep.mubr.f32.mxu0 0.0
        %649 = vmatmul.mubr.f32.gmra.mrb[0].mxu0 %v420
        %v650 = vpop.f32.mrb[0].mxu0
        %v651 = vadd.f32 %v468, %v650
        %v652 = vpop.f32.mrb[0].mxu0
        %653 = vmatprep.mubr.f32.mxu0 0.0
        %654 = vmatmul.mubr.f32.gmra.mrb[0].mxu0 %v421
        %v655 = vpop.f32.mrb[0].mxu0
        %v656 = vadd.f32 %v469, %v655
        %v657 = vpop.f32.mrb[0].mxu0
        %658 = vmatprep.mubr.f32.mxu0 0.0
        %659 = vmatmul.mubr.f32.gmra.mrb[0].mxu0 %v422
        %v660 = vpop.f32.mrb[0].mxu0
        %v661 = vadd.f32 %v470, %v660
        %v662 = vpop.f32.mrb[0].mxu0
        %663 = vmatprep.mubr.f32.mxu0 0.0
        %664 = vmatmul.mubr.f32.gmra.mrb[0].mxu0 %v423
        %v665 = vpop.f32.mrb[0].mxu0
        %v666 = vadd.f32 %v471, %v665
        %v667 = vpop.f32.mrb[0].mxu0
        %668 = vmatprep.mubr.f32.mxu0 0.0
        %669 = vmatmul.mubr.f32.gmra.mrb[0].mxu0 %v424
        %v670 = vpop.f32.mrb[0].mxu0
        %v671 = vadd.f32 %v472, %v670
        %v672 = vpop.f32.mrb[0].mxu0
        %673 = vmatprep.mubr.f32.mxu0 0.0
        %674 = vmatmul.mubr.f32.gmra.mrb[0].mxu0 %v425
        %v675 = vpop.f32.mrb[0].mxu0
        %v676 = vadd.f32 %v473, %v675
        %v677 = vpop.f32.mrb[0].mxu0
        %678 = vmatprep.mubr.f32.mxu0 0.0
        %679 = vmatmul.mubr.f32.gmra.mrb[0].mxu0 %v426
        %v680 = vpop.f32.mrb[0].mxu0
        %v681 = vadd.f32 %v474, %v680
        %v682 = vpop.f32.mrb[0].mxu0
        %683 = vmatprep.mubr.f32.mxu0 0.0
        %684 = vmatmul.mubr.f32.gmra.mrb[0].mxu0 %v427
        %v685 = vpop.f32.mrb[0].mxu0
        %v686 = vadd.f32 %v475, %v685
        %v687 = vpop.f32.mrb[0].mxu0
        %688 = vmatprep.mubr.f32.mxu0 0.0
        %689 = vmatmul.mubr.f32.gmra.mrb[0].mxu0 %v428
        %v690 = vpop.f32.mrb[0].mxu0
        %v691 = vadd.f32 %v476, %v690
        %v692 = vpop.f32.mrb[0].mxu0
        %693 = vmatprep.mubr.f32.mxu0 0.0
        %694 = vmatmul.mubr.f32.gmra.mrb[0].mxu0 %v429
        %v695 = vpop.f32.mrb[0].mxu0
        %v696 = vadd.f32 %v477, %v695
        %v697 = vpop.f32.mrb[0].mxu0
        %698 = vmatprep.mubr.f32.mxu0 0.0
        %699 = vmatmul.mubr.f32.gmra.mrb[0].mxu0 %v430
        %v700 = vpop.f32.mrb[0].mxu0
        %v701 = vadd.f32 %v478, %v700
        %v702 = vpop.f32.mrb[0].mxu0
        %703 = vdwg.mxu0
        %704 = vst [vmem:[%s347] sm:$0xff] %v546
        %705 = vst [vmem:[%s347 + $0x8] sm:$0xff] %v551
        %706 = vst [vmem:[%s347 + $0x10] sm:$0xff] %v556
        %707 = vst [vmem:[%s347 + $0x18] sm:$0xff] %v561
        %708 = vst [vmem:[%s347 + $0x20] sm:$0xff] %v566
        %709 = vst [vmem:[%s347 + $0x28] sm:$0xff] %v571
        %710 = vst [vmem:[%s347 + $0x30] sm:$0xff] %v576
        %711 = vst [vmem:[%s347 + $0x38] sm:$0xff] %v581
        %712 = vst [vmem:[%s347 + $0x40] sm:$0xff] %v586
        %713 = vst [vmem:[%s347 + $0x48] sm:$0xff] %v591
        %714 = vst [vmem:[%s347 + $0x50] sm:$0xff] %v596
        %715 = vst [vmem:[%s347 + $0x58] sm:$0xff] %v601
        %716 = vst [vmem:[%s347 + $0x60] sm:$0xff] %v606
        %717 = vst [vmem:[%s347 + $0x68] sm:$0xff] %v611
        %718 = vst [vmem:[%s347 + $0x70] sm:$0xff] %v616
        %719 = vst [vmem:[%s347 + $0x78] sm:$0xff] %v621
        %720 = vst [vmem:[%s347 + $0x80] sm:$0xff] %v626
        %721 = vst [vmem:[%s347 + $0x88] sm:$0xff] %v631
        %722 = vst [vmem:[%s347 + $0x90] sm:$0xff] %v636
        %723 = vst [vmem:[%s347 + $0x98] sm:$0xff] %v641
        %724 = vst [vmem:[%s347 + $0xa0] sm:$0xff] %v646
        %725 = vst [vmem:[%s347 + $0xa8] sm:$0xff] %v651
        %726 = vst [vmem:[%s347 + $0xb0] sm:$0xff] %v656
        %727 = vst [vmem:[%s347 + $0xb8] sm:$0xff] %v661
        %728 = vst [vmem:[%s347 + $0xc0] sm:$0xff] %v666
        %729 = vst [vmem:[%s347 + $0xc8] sm:$0xff] %v671
        %730 = vst [vmem:[%s347 + $0xd0] sm:$0xff] %v676
        %731 = vst [vmem:[%s347 + $0xd8] sm:$0xff] %v681
        %732 = vst [vmem:[%s347 + $0xe0] sm:$0xff] %v686
        %733 = vst [vmem:[%s347 + $0xe8] sm:$0xff] %v691
        %734 = vst [vmem:[%s347 + $0xf0] sm:$0xff] %v696
        %735 = vst [vmem:[%s347 + $0xf8] sm:$0xff] %v701
        %736 = vmax.xlane.f32.xlu0 %v546
        %v737 = vpop.xlane.xlu0 %736
        %738 = vmax.xlane.f32.xlu0 %v551
        %v739 = vpop.xlane.xlu0 %738
        %740 = vmax.xlane.f32.xlu0 %v556
        %v741 = vpop.xlane.xlu0 %740
        %742 = vmax.xlane.f32.xlu0 %v561
        %v743 = vpop.xlane.xlu0 %742
        %744 = vmax.xlane.f32.xlu0 %v566
        %v745 = vpop.xlane.xlu0 %744
        %746 = vmax.xlane.f32.xlu0 %v571
        %v747 = vpop.xlane.xlu0 %746
        %748 = vmax.xlane.f32.xlu0 %v576
        %v749 = vpop.xlane.xlu0 %748
        %750 = vmax.xlane.f32.xlu0 %v581
        %v751 = vpop.xlane.xlu0 %750
        %752 = vmax.xlane.f32.xlu0 %v586
        %v753 = vpop.xlane.xlu0 %752
        %754 = vmax.xlane.f32.xlu0 %v591
        %v755 = vpop.xlane.xlu0 %754
        %756 = vmax.xlane.f32.xlu0 %v596
        %v757 = vpop.xlane.xlu0 %756
        %758 = vmax.xlane.f32.xlu0 %v601
        %v759 = vpop.xlane.xlu0 %758
        %760 = vmax.xlane.f32.xlu0 %v606
        %v761 = vpop.xlane.xlu0 %760
        %762 = vmax.xlane.f32.xlu0 %v611
        %v763 = vpop.xlane.xlu0 %762
        %764 = vmax.xlane.f32.xlu0 %v616
        %v765 = vpop.xlane.xlu0 %764
        %766 = vmax.xlane.f32.xlu0 %v621
        %v767 = vpop.xlane.xlu0 %766
        %768 = vmax.xlane.f32.xlu0 %v626
        %v769 = vpop.xlane.xlu0 %768
        %770 = vmax.xlane.f32.xlu0 %v631
        %v771 = vpop.xlane.xlu0 %770
        %772 = vmax.xlane.f32.xlu0 %v636
        %v773 = vpop.xlane.xlu0 %772
        %774 = vmax.xlane.f32.xlu0 %v641
        %v775 = vpop.xlane.xlu0 %774
        %776 = vmax.xlane.f32.xlu0 %v646
        %v777 = vpop.xlane.xlu0 %776
        %778 = vmax.xlane.f32.xlu0 %v651
        %v779 = vpop.xlane.xlu0 %778
        %780 = vmax.xlane.f32.xlu0 %v656
        %v781 = vpop.xlane.xlu0 %780
        %782 = vmax.xlane.f32.xlu0 %v661
        %v783 = vpop.xlane.xlu0 %782
        %784 = vmax.xlane.f32.xlu0 %v666
        %v785 = vpop.xlane.xlu0 %784
        %786 = vmax.xlane.f32.xlu0 %v671
        %v787 = vpop.xlane.xlu0 %786
        %788 = vmax.xlane.f32.xlu0 %v676
        %v789 = vpop.xlane.xlu0 %788
        %790 = vmax.xlane.f32.xlu0 %v681
        %v791 = vpop.xlane.xlu0 %790
        %792 = vmax.xlane.f32.xlu0 %v686
        %v793 = vpop.xlane.xlu0 %792
        %794 = vmax.xlane.f32.xlu0 %v691
        %v795 = vpop.xlane.xlu0 %794
        %796 = vmax.xlane.f32.xlu0 %v696
        %v797 = vpop.xlane.xlu0 %796
        %798 = vmax.xlane.f32.xlu0 %v701
        %v799 = vpop.xlane.xlu0 %798
        %v800 = vsub.f32 %v546, %v737
        %v801 = vsub.f32 %v551, %v739
        %v802 = vsub.f32 %v556, %v741
        %v803 = vsub.f32 %v561, %v743
        %v804 = vsub.f32 %v566, %v745
        %v805 = vsub.f32 %v571, %v747
        %v806 = vsub.f32 %v576, %v749
        %v807 = vsub.f32 %v581, %v751
        %v808 = vsub.f32 %v586, %v753
        %v809 = vsub.f32 %v591, %v755
        %v810 = vsub.f32 %v596, %v757
        %v811 = vsub.f32 %v601, %v759
        %v812 = vsub.f32 %v606, %v761
        %v813 = vsub.f32 %v611, %v763
        %v814 = vsub.f32 %v616, %v765
        %v815 = vsub.f32 %v621, %v767
        %v816 = vsub.f32 %v626, %v769
        %v817 = vsub.f32 %v631, %v771
        %v818 = vsub.f32 %v636, %v773
        %v819 = vsub.f32 %v641, %v775
        %v820 = vsub.f32 %v646, %v777
        %v821 = vsub.f32 %v651, %v779
        %v822 = vsub.f32 %v656, %v781
        %v823 = vsub.f32 %v661, %v783
        %v824 = vsub.f32 %v666, %v785
        %v825 = vsub.f32 %v671, %v787
        %v826 = vsub.f32 %v676, %v789
        %v827 = vsub.f32 %v681, %v791
        %v828 = vsub.f32 %v686, %v793
        %v829 = vsub.f32 %v691, %v795
        %v830 = vsub.f32 %v696, %v797
        %v831 = vsub.f32 %v701, %v799
        %v832 = vmul.f32 %v800, 1.442695
        %v833 = vpow.pop %v832
        %v834 = vmul.f32 %v801, 1.442695
        %v835 = vpow.pop %v834
        %v836 = vmul.f32 %v802, 1.442695
        %v837 = vpow.pop %v836
        %v838 = vmul.f32 %v803, 1.442695
        %v839 = vpow.pop %v838
        %v840 = vmul.f32 %v804, 1.442695
        %v841 = vpow.pop %v840
        %v842 = vmul.f32 %v805, 1.442695
        %v843 = vpow.pop %v842
        %v844 = vmul.f32 %v806, 1.442695
        %v845 = vpow.pop %v844
        %v846 = vmul.f32 %v807, 1.442695
        %v847 = vpow.pop %v846
        %v848 = vmul.f32 %v808, 1.442695
        %v849 = vpow.pop %v848
        %v850 = vmul.f32 %v809, 1.442695
        %v851 = vpow.pop %v850
        %v852 = vmul.f32 %v810, 1.442695
        %v853 = vpow.pop %v852
        %v854 = vmul.f32 %v811, 1.442695
        %v855 = vpow.pop %v854
        %v856 = vmul.f32 %v812, 1.442695
        %v857 = vpow.pop %v856
        %v858 = vmul.f32 %v813, 1.442695
        %v859 = vpow.pop %v858
        %v860 = vmul.f32 %v814, 1.442695
        %v861 = vpow.pop %v860
        %v862 = vmul.f32 %v815, 1.442695
        %v863 = vpow.pop %v862
        %v864 = vmul.f32 %v816, 1.442695
        %v865 = vpow.pop %v864
        %v866 = vmul.f32 %v817, 1.442695
        %v867 = vpow.pop %v866
        %v868 = vmul.f32 %v818, 1.442695
        %v869 = vpow.pop %v868
        %v870 = vmul.f32 %v819, 1.442695
        %v871 = vpow.pop %v870
        %v872 = vmul.f32 %v820, 1.442695
        %v873 = vpow.pop %v872
        %v874 = vmul.f32 %v821, 1.442695
        %v875 = vpow.pop %v874
        %v876 = vmul.f32 %v822, 1.442695
        %v877 = vpow.pop %v876
        %v878 = vmul.f32 %v823, 1.442695
        %v879 = vpow.pop %v878
        %v880 = vmul.f32 %v824, 1.442695
        %v881 = vpow.pop %v880
        %v882 = vmul.f32 %v825, 1.442695
        %v883 = vpow.pop %v882
        %v884 = vmul.f32 %v826, 1.442695
        %v885 = vpow.pop %v884
        %v886 = vmul.f32 %v827, 1.442695
        %v887 = vpow.pop %v886
        %v888 = vmul.f32 %v828, 1.442695
        %v889 = vpow.pop %v888
        %v890 = vmul.f32 %v829, 1.442695
        %v891 = vpow.pop %v890
        %v892 = vmul.f32 %v830, 1.442695
        %v893 = vpow.pop %v892
        %v894 = vmul.f32 %v831, 1.442695
        %v895 = vpow.pop %v894
        %896 = vadd.xlane.f32.xlu0 %v833
        %v897 = vpop.xlane.xlu0 %896
        %898 = vadd.xlane.f32.xlu0 %v835
        %v899 = vpop.xlane.xlu0 %898
        %900 = vadd.xlane.f32.xlu0 %v837
        %v901 = vpop.xlane.xlu0 %900
        %902 = vadd.xlane.f32.xlu0 %v839
        %v903 = vpop.xlane.xlu0 %902
        %904 = vadd.xlane.f32.xlu0 %v841
        %v905 = vpop.xlane.xlu0 %904
        %906 = vadd.xlane.f32.xlu0 %v843
        %v907 = vpop.xlane.xlu0 %906
        %908 = vadd.xlane.f32.xlu0 %v845
        %v909 = vpop.xlane.xlu0 %908
        %910 = vadd.xlane.f32.xlu0 %v847
        %v911 = vpop.xlane.xlu0 %910
        %912 = vadd.xlane.f32.xlu0 %v849
        %v913 = vpop.xlane.xlu0 %912
        %914 = vadd.xlane.f32.xlu0 %v851
        %v915 = vpop.xlane.xlu0 %914
        %916 = vadd.xlane.f32.xlu0 %v853
        %v917 = vpop.xlane.xlu0 %916
        %918 = vadd.xlane.f32.xlu0 %v855
        %v919 = vpop.xlane.xlu0 %918
        %920 = vadd.xlane.f32.xlu0 %v857
        %v921 = vpop.xlane.xlu0 %920
        %922 = vadd.xlane.f32.xlu0 %v859
        %v923 = vpop.xlane.xlu0 %922
        %924 = vadd.xlane.f32.xlu0 %v861
        %v925 = vpop.xlane.xlu0 %924
        %926 = vadd.xlane.f32.xlu0 %v863
        %v927 = vpop.xlane.xlu0 %926
        %928 = vadd.xlane.f32.xlu0 %v865
        %v929 = vpop.xlane.xlu0 %928
        %930 = vadd.xlane.f32.xlu0 %v867
        %v931 = vpop.xlane.xlu0 %930
        %932 = vadd.xlane.f32.xlu0 %v869
        %v933 = vpop.xlane.xlu0 %932
        %934 = vadd.xlane.f32.xlu0 %v871
        %v935 = vpop.xlane.xlu0 %934
        %936 = vadd.xlane.f32.xlu0 %v873
        %v937 = vpop.xlane.xlu0 %936
        %938 = vadd.xlane.f32.xlu0 %v875
        %v939 = vpop.xlane.xlu0 %938
        %940 = vadd.xlane.f32.xlu0 %v877
        %v941 = vpop.xlane.xlu0 %940
        %942 = vadd.xlane.f32.xlu0 %v879
        %v943 = vpop.xlane.xlu0 %942
        %944 = vadd.xlane.f32.xlu0 %v881
        %v945 = vpop.xlane.xlu0 %944
        %946 = vadd.xlane.f32.xlu0 %v883
        %v947 = vpop.xlane.xlu0 %946
        %948 = vadd.xlane.f32.xlu0 %v885
        %v949 = vpop.xlane.xlu0 %948
        %950 = vadd.xlane.f32.xlu0 %v887
        %v951 = vpop.xlane.xlu0 %950
        %952 = vadd.xlane.f32.xlu0 %v889
        %v953 = vpop.xlane.xlu0 %952
        %954 = vadd.xlane.f32.xlu0 %v891
        %v955 = vpop.xlane.xlu0 %954
        %956 = vadd.xlane.f32.xlu0 %v893
        %v957 = vpop.xlane.xlu0 %956
        %958 = vadd.xlane.f32.xlu0 %v895
        %v959 = vpop.xlane.xlu0 %958
        %v960 = vrcp.pop %v897
        %v961 = vmul.f32 %v833, %v960
        %v962 = vrcp.pop %v899
        %v963 = vmul.f32 %v835, %v962
        %v964 = vrcp.pop %v901
        %v965 = vmul.f32 %v837, %v964
        %v966 = vrcp.pop %v903
        %v967 = vmul.f32 %v839, %v966
        %v968 = vrcp.pop %v905
        %v969 = vmul.f32 %v841, %v968
        %v970 = vrcp.pop %v907
        %v971 = vmul.f32 %v843, %v970
        %v972 = vrcp.pop %v909
        %v973 = vmul.f32 %v845, %v972
        %v974 = vrcp.pop %v911
        %v975 = vmul.f32 %v847, %v974
        %v976 = vrcp.pop %v913
        %v977 = vmul.f32 %v849, %v976
        %v978 = vrcp.pop %v915
        %v979 = vmul.f32 %v851, %v978
        %v980 = vrcp.pop %v917
        %v981 = vmul.f32 %v853, %v980
        %v982 = vrcp.pop %v919
        %v983 = vmul.f32 %v855, %v982
        %v984 = vrcp.pop %v921
        %v985 = vmul.f32 %v857, %v984
        %v986 = vrcp.pop %v923
        %v987 = vmul.f32 %v859, %v986
        %v988 = vrcp.pop %v925
        %v989 = vmul.f32 %v861, %v988
        %v990 = vrcp.pop %v927
        %v991 = vmul.f32 %v863, %v990
        %v992 = vrcp.pop %v929
        %v993 = vmul.f32 %v865, %v992
        %v994 = vrcp.pop %v931
        %v995 = vmul.f32 %v867, %v994
        %v996 = vrcp.pop %v933
        %v997 = vmul.f32 %v869, %v996
        %v998 = vrcp.pop %v935
        %v999 = vmul.f32 %v871, %v998
        %v1000 = vrcp.pop %v937
        %v1001 = vmul.f32 %v873, %v1000
        %v1002 = vrcp.pop %v939
        %v1003 = vmul.f32 %v875, %v1002
        %v1004 = vrcp.pop %v941
        %v1005 = vmul.f32 %v877, %v1004
        %v1006 = vrcp.pop %v943
        %v1007 = vmul.f32 %v879, %v1006
        %v1008 = vrcp.pop %v945
        %v1009 = vmul.f32 %v881, %v1008
        %v1010 = vrcp.pop %v947
        %v1011 = vmul.f32 %v883, %v1010
        %v1012 = vrcp.pop %v949
        %v1013 = vmul.f32 %v885, %v1012
        %v1014 = vrcp.pop %v951
        %v1015 = vmul.f32 %v887, %v1014
        %v1016 = vrcp.pop %v953
        %v1017 = vmul.f32 %v889, %v1016
        %v1018 = vrcp.pop %v955
        %v1019 = vmul.f32 %v891, %v1018
        %v1020 = vrcp.pop %v957
        %v1021 = vmul.f32 %v893, %v1020
        %v1022 = vrcp.pop %v959
        %v1023 = vmul.f32 %v895, %v1022
        %1024 = vst [vmem:[%s354] sm:$0xff] %v961
        %1025 = vst [vmem:[%s354 + $0x8] sm:$0xff] %v963
        %1026 = vst [vmem:[%s354 + $0x10] sm:$0xff] %v965
        %1027 = vst [vmem:[%s354 + $0x18] sm:$0xff] %v967
        %1028 = vst [vmem:[%s354 + $0x20] sm:$0xff] %v969
        %1029 = vst [vmem:[%s354 + $0x28] sm:$0xff] %v971
        %1030 = vst [vmem:[%s354 + $0x30] sm:$0xff] %v973
        %1031 = vst [vmem:[%s354 + $0x38] sm:$0xff] %v975
        %1032 = vst [vmem:[%s354 + $0x40] sm:$0xff] %v977
        %1033 = vst [vmem:[%s354 + $0x48] sm:$0xff] %v979
        %1034 = vst [vmem:[%s354 + $0x50] sm:$0xff] %v981
        %1035 = vst [vmem:[%s354 + $0x58] sm:$0xff] %v983
        %1036 = vst [vmem:[%s354 + $0x60] sm:$0xff] %v985
        %1037 = vst [vmem:[%s354 + $0x68] sm:$0xff] %v987
        %1038 = vst [vmem:[%s354 + $0x70] sm:$0xff] %v989
        %1039 = vst [vmem:[%s354 + $0x78] sm:$0xff] %v991
        %1040 = vst [vmem:[%s354 + $0x80] sm:$0xff] %v993
        %1041 = vst [vmem:[%s354 + $0x88] sm:$0xff] %v995
        %1042 = vst [vmem:[%s354 + $0x90] sm:$0xff] %v997
        %1043 = vst [vmem:[%s354 + $0x98] sm:$0xff] %v999
        %1044 = vst [vmem:[%s354 + $0xa0] sm:$0xff] %v1001
        %1045 = vst [vmem:[%s354 + $0xa8] sm:$0xff] %v1003
        %1046 = vst [vmem:[%s354 + $0xb0] sm:$0xff] %v1005
        %1047 = vst [vmem:[%s354 + $0xb8] sm:$0xff] %v1007
        %1048 = vst [vmem:[%s354 + $0xc0] sm:$0xff] %v1009
        %1049 = vst [vmem:[%s354 + $0xc8] sm:$0xff] %v1011
        %1050 = vst [vmem:[%s354 + $0xd0] sm:$0xff] %v1013
        %1051 = vst [vmem:[%s354 + $0xd8] sm:$0xff] %v1015
        %1052 = vst [vmem:[%s354 + $0xe0] sm:$0xff] %v1017
        %1053 = vst [vmem:[%s354 + $0xe8] sm:$0xff] %v1019
        %1054 = vst [vmem:[%s354 + $0xf0] sm:$0xff] %v1021
        %1055 = vst [vmem:[%s354 + $0xf8] sm:$0xff] %v1023
        %v1056 = vld [vmem:[#allocation7] sm:$0xff]
        %v1057 = vld [vmem:[#allocation7 + $0x8] sm:$0xff]
        %v1058 = vld [vmem:[#allocation7 + $0x10] sm:$0xff]
        %v1059 = vld [vmem:[#allocation7 + $0x18] sm:$0xff]
        %v1060 = vld [vmem:[#allocation7 + $0x20] sm:$0xff]
        %v1061 = vld [vmem:[#allocation7 + $0x28] sm:$0xff]
        %v1062 = vld [vmem:[#allocation7 + $0x30] sm:$0xff]
        %v1063 = vld [vmem:[#allocation7 + $0x38] sm:$0xff]
        %v1064 = vld [vmem:[#allocation7 + $0x40] sm:$0xff]
        %v1065 = vld [vmem:[#allocation7 + $0x48] sm:$0xff]
        %v1066 = vld [vmem:[#allocation7 + $0x50] sm:$0xff]
        %v1067 = vld [vmem:[#allocation7 + $0x58] sm:$0xff]
        %v1068 = vld [vmem:[#allocation7 + $0x60] sm:$0xff]
        %v1069 = vld [vmem:[#allocation7 + $0x68] sm:$0xff]
        %v1070 = vld [vmem:[#allocation7 + $0x70] sm:$0xff]
        %v1071 = vld [vmem:[#allocation7 + $0x78] sm:$0xff]
        %1072 = vmatprep.subr.mxu0 0.0
        %1073 = vmatpush1.msra.mxu0 %v1056
        %1074 = vmatprep.subr.mxu0 0.0
        %1075 = vmatpush1.msra.mxu0 %v1057
        %1076 = vmatprep.subr.mxu0 0.0
        %1077 = vmatpush1.msra.mxu0 %v1058
        %1078 = vmatprep.subr.mxu0 0.0
        %1079 = vmatpush1.msra.mxu0 %v1059
        %1080 = vmatprep.subr.mxu0 0.0
        %1081 = vmatpush1.msra.mxu0 %v1060
        %1082 = vmatprep.subr.mxu0 0.0
        %1083 = vmatpush1.msra.mxu0 %v1061
        %1084 = vmatprep.subr.mxu0 0.0
        %1085 = vmatpush1.msra.mxu0 %v1062
        %1086 = vmatprep.subr.mxu0 0.0
        %1087 = vmatpush1.msra.mxu0 %v1063
        %1088 = vmatprep.subr.mxu0 0.0
        %1089 = vmatpush1.msra.mxu0 %v1064
        %1090 = vmatprep.subr.mxu0 0.0
        %1091 = vmatpush1.msra.mxu0 %v1065
        %1092 = vmatprep.subr.mxu0 0.0
        %1093 = vmatpush1.msra.mxu0 %v1066
        %1094 = vmatprep.subr.mxu0 0.0
        %1095 = vmatpush1.msra.mxu0 %v1067
        %1096 = vmatprep.subr.mxu0 0.0
        %1097 = vmatpush1.msra.mxu0 %v1068
        %1098 = vmatprep.subr.mxu0 0.0
        %1099 = vmatpush1.msra.mxu0 %v1069
        %1100 = vmatprep.subr.mxu0 0.0
        %1101 = vmatpush1.msra.mxu0 %v1070
        %1102 = vmatprep.subr.mxu0 0.0
        %1103 = vmatpush1.msra.mxu0 %v1071
        %1104 = vmatprep.subr.mxu0 0.0
        %1105 = vmatpush1.msra.mxu0 0.0
        %1106 = vmatprep.subr.mxu0 0.0
        %1107 = vmatpush1.msra.mxu0 0.0
        %1108 = vmatprep.subr.mxu0 0.0
        %1109 = vmatpush1.msra.mxu0 0.0
        %1110 = vmatprep.subr.mxu0 0.0
        %1111 = vmatpush1.msra.mxu0 0.0
        %1112 = vmatprep.subr.mxu0 0.0
        %1113 = vmatpush1.msra.mxu0 0.0
        %1114 = vmatprep.subr.mxu0 0.0
        %1115 = vmatpush1.msra.mxu0 0.0
        %1116 = vmatprep.subr.mxu0 0.0
        %1117 = vmatpush1.msra.mxu0 0.0
        %1118 = vmatprep.subr.mxu0 0.0
        %1119 = vmatpush1.msra.mxu0 0.0
        %1120 = vmatprep.subr.mxu0 0.0
        %1121 = vmatpush1.msra.mxu0 0.0
        %1122 = vmatprep.subr.mxu0 0.0
        %1123 = vmatpush1.msra.mxu0 0.0
        %1124 = vmatprep.subr.mxu0 0.0
        %1125 = vmatpush1.msra.mxu0 0.0
        %1126 = vmatprep.subr.mxu0 0.0
        %1127 = vmatpush1.msra.mxu0 0.0
        %1128 = vmatprep.subr.mxu0 0.0
        %1129 = vmatpush1.msra.mxu0 0.0
        %1130 = vmatprep.subr.mxu0 0.0
        %1131 = vmatpush1.msra.mxu0 0.0
        %1132 = vmatprep.subr.mxu0 0.0
        %1133 = vmatpush1.msra.mxu0 0.0
        %1134 = vmatprep.subr.mxu0 0.0
        %1135 = vmatpush1.msra.mxu0 0.0
        %1136 = vmatprep.mubr.f32.mxu0 0.0
        %1137 = vmatmul.mubr.f32.gmra.mrb[0].mxu0 %v961
        %v1138 = vpop.f32.mrb[0].mxu0
        %v1139 = vadd.f32 0.0, %v1138
        %v1140 = vpop.f32.mrb[0].mxu0
        %1141 = vmatprep.mubr.f32.mxu0 0.0
        %1142 = vmatmul.mubr.f32.gmra.mrb[0].mxu0 %v963
        %v1143 = vpop.f32.mrb[0].mxu0
        %v1144 = vadd.f32 0.0, %v1143
        %v1145 = vpop.f32.mrb[0].mxu0
        %1146 = vmatprep.mubr.f32.mxu0 0.0
        %1147 = vmatmul.mubr.f32.gmra.mrb[0].mxu0 %v965
        %v1148 = vpop.f32.mrb[0].mxu0
        %v1149 = vadd.f32 0.0, %v1148
        %v1150 = vpop.f32.mrb[0].mxu0
        %1151 = vmatprep.mubr.f32.mxu0 0.0
        %1152 = vmatmul.mubr.f32.gmra.mrb[0].mxu0 %v967
        %v1153 = vpop.f32.mrb[0].mxu0
        %v1154 = vadd.f32 0.0, %v1153
        %v1155 = vpop.f32.mrb[0].mxu0
        %1156 = vmatprep.mubr.f32.mxu0 0.0
        %1157 = vmatmul.mubr.f32.gmra.mrb[0].mxu0 %v969
        %v1158 = vpop.f32.mrb[0].mxu0
        %v1159 = vadd.f32 0.0, %v1158
        %v1160 = vpop.f32.mrb[0].mxu0
        %1161 = vmatprep.mubr.f32.mxu0 0.0
        %1162 = vmatmul.mubr.f32.gmra.mrb[0].mxu0 %v971
        %v1163 = vpop.f32.mrb[0].mxu0
        %v1164 = vadd.f32 0.0, %v1163
        %v1165 = vpop.f32.mrb[0].mxu0
        %1166 = vmatprep.mubr.f32.mxu0 0.0
        %1167 = vmatmul.mubr.f32.gmra.mrb[0].mxu0 %v973
        %v1168 = vpop.f32.mrb[0].mxu0
        %v1169 = vadd.f32 0.0, %v1168
        %v1170 = vpop.f32.mrb[0].mxu0
        %1171 = vmatprep.mubr.f32.mxu0 0.0
        %1172 = vmatmul.mubr.f32.gmra.mrb[0].mxu0 %v975
        %v1173 = vpop.f32.mrb[0].mxu0
        %v1174 = vadd.f32 0.0, %v1173
        %v1175 = vpop.f32.mrb[0].mxu0
        %1176 = vmatprep.mubr.f32.mxu0 0.0
        %1177 = vmatmul.mubr.f32.gmra.mrb[0].mxu0 %v977
        %v1178 = vpop.f32.mrb[0].mxu0
        %v1179 = vadd.f32 0.0, %v1178
        %v1180 = vpop.f32.mrb[0].mxu0
        %1181 = vmatprep.mubr.f32.mxu0 0.0
        %1182 = vmatmul.mubr.f32.gmra.mrb[0].mxu0 %v979
        %v1183 = vpop.f32.mrb[0].mxu0
        %v1184 = vadd.f32 0.0, %v1183
        %v1185 = vpop.f32.mrb[0].mxu0
        %1186 = vmatprep.mubr.f32.mxu0 0.0
        %1187 = vmatmul.mubr.f32.gmra.mrb[0].mxu0 %v981
        %v1188 = vpop.f32.mrb[0].mxu0
        %v1189 = vadd.f32 0.0, %v1188
        %v1190 = vpop.f32.mrb[0].mxu0
        %1191 = vmatprep.mubr.f32.mxu0 0.0
        %1192 = vmatmul.mubr.f32.gmra.mrb[0].mxu0 %v983
        %v1193 = vpop.f32.mrb[0].mxu0
        %v1194 = vadd.f32 0.0, %v1193
        %v1195 = vpop.f32.mrb[0].mxu0
        %1196 = vmatprep.mubr.f32.mxu0 0.0
        %1197 = vmatmul.mubr.f32.gmra.mrb[0].mxu0 %v985
        %v1198 = vpop.f32.mrb[0].mxu0
        %v1199 = vadd.f32 0.0, %v1198
        %v1200 = vpop.f32.mrb[0].mxu0
        %1201 = vmatprep.mubr.f32.mxu0 0.0
        %1202 = vmatmul.mubr.f32.gmra.mrb[0].mxu0 %v987
        %v1203 = vpop.f32.mrb[0].mxu0
        %v1204 = vadd.f32 0.0, %v1203
        %v1205 = vpop.f32.mrb[0].mxu0
        %1206 = vmatprep.mubr.f32.mxu0 0.0
        %1207 = vmatmul.mubr.f32.gmra.mrb[0].mxu0 %v989
        %v1208 = vpop.f32.mrb[0].mxu0
        %v1209 = vadd.f32 0.0, %v1208
        %v1210 = vpop.f32.mrb[0].mxu0
        %1211 = vmatprep.mubr.f32.mxu0 0.0
        %1212 = vmatmul.mubr.f32.gmra.mrb[0].mxu0 %v991
        %v1213 = vpop.f32.mrb[0].mxu0
        %v1214 = vadd.f32 0.0, %v1213
        %v1215 = vpop.f32.mrb[0].mxu0
        %1216 = vmatprep.mubr.f32.mxu0 0.0
        %1217 = vmatmul.mubr.f32.gmra.mrb[0].mxu0 %v993
        %v1218 = vpop.f32.mrb[0].mxu0
        %v1219 = vadd.f32 0.0, %v1218
        %v1220 = vpop.f32.mrb[0].mxu0
        %1221 = vmatprep.mubr.f32.mxu0 0.0
        %1222 = vmatmul.mubr.f32.gmra.mrb[0].mxu0 %v995
        %v1223 = vpop.f32.mrb[0].mxu0
        %v1224 = vadd.f32 0.0, %v1223
        %v1225 = vpop.f32.mrb[0].mxu0
        %1226 = vmatprep.mubr.f32.mxu0 0.0
        %1227 = vmatmul.mubr.f32.gmra.mrb[0].mxu0 %v997
        %v1228 = vpop.f32.mrb[0].mxu0
        %v1229 = vadd.f32 0.0, %v1228
        %v1230 = vpop.f32.mrb[0].mxu0
        %1231 = vmatprep.mubr.f32.mxu0 0.0
        %1232 = vmatmul.mubr.f32.gmra.mrb[0].mxu0 %v999
        %v1233 = vpop.f32.mrb[0].mxu0
        %v1234 = vadd.f32 0.0, %v1233
        %v1235 = vpop.f32.mrb[0].mxu0
        %1236 = vmatprep.mubr.f32.mxu0 0.0
        %1237 = vmatmul.mubr.f32.gmra.mrb[0].mxu0 %v1001
        %v1238 = vpop.f32.mrb[0].mxu0
        %v1239 = vadd.f32 0.0, %v1238
        %v1240 = vpop.f32.mrb[0].mxu0
        %1241 = vmatprep.mubr.f32.mxu0 0.0
        %1242 = vmatmul.mubr.f32.gmra.mrb[0].mxu0 %v1003
        %v1243 = vpop.f32.mrb[0].mxu0
        %v1244 = vadd.f32 0.0, %v1243
        %v1245 = vpop.f32.mrb[0].mxu0
        %1246 = vmatprep.mubr.f32.mxu0 0.0
        %1247 = vmatmul.mubr.f32.gmra.mrb[0].mxu0 %v1005
        %v1248 = vpop.f32.mrb[0].mxu0
        %v1249 = vadd.f32 0.0, %v1248
        %v1250 = vpop.f32.mrb[0].mxu0
        %1251 = vmatprep.mubr.f32.mxu0 0.0
        %1252 = vmatmul.mubr.f32.gmra.mrb[0].mxu0 %v1007
        %v1253 = vpop.f32.mrb[0].mxu0
        %v1254 = vadd.f32 0.0, %v1253
        %v1255 = vpop.f32.mrb[0].mxu0
        %1256 = vmatprep.mubr.f32.mxu0 0.0
        %1257 = vmatmul.mubr.f32.gmra.mrb[0].mxu0 %v1009
        %v1258 = vpop.f32.mrb[0].mxu0
        %v1259 = vadd.f32 0.0, %v1258
        %v1260 = vpop.f32.mrb[0].mxu0
        %1261 = vmatprep.mubr.f32.mxu0 0.0
        %1262 = vmatmul.mubr.f32.gmra.mrb[0].mxu0 %v1011
        %v1263 = vpop.f32.mrb[0].mxu0
        %v1264 = vadd.f32 0.0, %v1263
        %v1265 = vpop.f32.mrb[0].mxu0
        %1266 = vmatprep.mubr.f32.mxu0 0.0
        %1267 = vmatmul.mubr.f32.gmra.mrb[0].mxu0 %v1013
        %v1268 = vpop.f32.mrb[0].mxu0
        %v1269 = vadd.f32 0.0, %v1268
        %v1270 = vpop.f32.mrb[0].mxu0
        %1271 = vmatprep.mubr.f32.mxu0 0.0
        %1272 = vmatmul.mubr.f32.gmra.mrb[0].mxu0 %v1015
        %v1273 = vpop.f32.mrb[0].mxu0
        %v1274 = vadd.f32 0.0, %v1273
        %v1275 = vpop.f32.mrb[0].mxu0
        %1276 = vmatprep.mubr.f32.mxu0 0.0
        %1277 = vmatmul.mubr.f32.gmra.mrb[0].mxu0 %v1017
        %v1278 = vpop.f32.mrb[0].mxu0
        %v1279 = vadd.f32 0.0, %v1278
        %v1280 = vpop.f32.mrb[0].mxu0
        %1281 = vmatprep.mubr.f32.mxu0 0.0
        %1282 = vmatmul.mubr.f32.gmra.mrb[0].mxu0 %v1019
        %v1283 = vpop.f32.mrb[0].mxu0
        %v1284 = vadd.f32 0.0, %v1283
        %v1285 = vpop.f32.mrb[0].mxu0
        %1286 = vmatprep.mubr.f32.mxu0 0.0
        %1287 = vmatmul.mubr.f32.gmra.mrb[0].mxu0 %v1021
        %v1288 = vpop.f32.mrb[0].mxu0
        %v1289 = vadd.f32 0.0, %v1288
        %v1290 = vpop.f32.mrb[0].mxu0
        %1291 = vmatprep.mubr.f32.mxu0 0.0
        %1292 = vmatmul.mubr.f32.gmra.mrb[0].mxu0 %v1023
        %v1293 = vpop.f32.mrb[0].mxu0
        %v1294 = vadd.f32 0.0, %v1293
        %v1295 = vpop.f32.mrb[0].mxu0
        %1296 = vdwg.mxu0
        %1297 = vst [vmem:[%s361] sm:$0xff] %v1139
        %1298 = vst [vmem:[%s361 + $0x8] sm:$0xff] %v1144
        %1299 = vst [vmem:[%s361 + $0x10] sm:$0xff] %v1149
        %1300 = vst [vmem:[%s361 + $0x18] sm:$0xff] %v1154
        %1301 = vst [vmem:[%s361 + $0x20] sm:$0xff] %v1159
        %1302 = vst [vmem:[%s361 + $0x28] sm:$0xff] %v1164
        %1303 = vst [vmem:[%s361 + $0x30] sm:$0xff] %v1169
        %1304 = vst [vmem:[%s361 + $0x38] sm:$0xff] %v1174
        %1305 = vst [vmem:[%s361 + $0x40] sm:$0xff] %v1179
        %1306 = vst [vmem:[%s361 + $0x48] sm:$0xff] %v1184
        %1307 = vst [vmem:[%s361 + $0x50] sm:$0xff] %v1189
        %1308 = vst [vmem:[%s361 + $0x58] sm:$0xff] %v1194
        %1309 = vst [vmem:[%s361 + $0x60] sm:$0xff] %v1199
        %1310 = vst [vmem:[%s361 + $0x68] sm:$0xff] %v1204
        %1311 = vst [vmem:[%s361 + $0x70] sm:$0xff] %v1209
        %1312 = vst [vmem:[%s361 + $0x78] sm:$0xff] %v1214
        %1313 = vst [vmem:[%s361 + $0x80] sm:$0xff] %v1219
        %1314 = vst [vmem:[%s361 + $0x88] sm:$0xff] %v1224
        %1315 = vst [vmem:[%s361 + $0x90] sm:$0xff] %v1229
        %1316 = vst [vmem:[%s361 + $0x98] sm:$0xff] %v1234
        %1317 = vst [vmem:[%s361 + $0xa0] sm:$0xff] %v1239
        %1318 = vst [vmem:[%s361 + $0xa8] sm:$0xff] %v1244
        %1319 = vst [vmem:[%s361 + $0xb0] sm:$0xff] %v1249
        %1320 = vst [vmem:[%s361 + $0xb8] sm:$0xff] %v1254
        %1321 = vst [vmem:[%s361 + $0xc0] sm:$0xff] %v1259
        %1322 = vst [vmem:[%s361 + $0xc8] sm:$0xff] %v1264
        %1323 = vst [vmem:[%s361 + $0xd0] sm:$0xff] %v1269
        %1324 = vst [vmem:[%s361 + $0xd8] sm:$0xff] %v1274
        %1325 = vst [vmem:[%s361 + $0xe0] sm:$0xff] %v1279
        %1326 = vst [vmem:[%s361 + $0xe8] sm:$0xff] %v1284
        %1327 = vst [vmem:[%s361 + $0xf0] sm:$0xff] %v1289
        %1328 = vst [vmem:[%s361 + $0xf8] sm:$0xff] %v1294
        %s1329 = sand.u32 %s147, 1
        %s1330 = scalar_lea.sflag [#allocation4], %s1329
        %s1331 = sand.u32 %s147, 1
        %s1332 = smul.addr %s1331, 256
        %s1333 = scalar_lea.vmem [#allocation10], %s1332
        %s1334 = sand.u32 %s29, 1
        %s1335 = scalar_lea.sflag [#allocation12], %s1334
        %s1336 = sand.u32 %s175, 1
        %s1337 = smul.addr %s1336, 256
        %s1338 = scalar_lea.vmem [#allocation11], %s1337
        %s1339 = sand.u32 %s29, 1
        %s1340 = scalar_lea.sflag [#allocation12], %s1339
        %s1341 = sand.u32 %s203, 1
        %s1342 = smul.addr %s1341, 256
        %s1343 = scalar_lea.vmem [#allocation13], %s1342
        // Predicated region
        $region53: #{tpu_custom_call.1} parent=35 // pred_check
          %p1344 = pneg %p157
        $region54: #{tpu_custom_call.1} parent=35 // pred_check_branch
          %1346 = sbr.rel (%p1344) target = $region56
        $region55: #{tpu_custom_call.1} parent=35 // pred_region
          %s1347 = smul.u32 32, %s34
          %s1349 = ssub.s32 4096, 4096
          %1350 = vsyncadd %s1330, %s1349
          %s1351 = smul.addr %s33, 32
          %s1352 = sadd.s32 %s1347, %s1351
          %s1353 = smul.addr %s1352, 128
          %s1354 = scalar_lea.hbm %s4, %s1353
          %s1355 = sshll.u32 %s1333, 4
          %s1356 = int_to_ptr.vmem [resolvable:$true] %s1355
          %1361 = dma.vmem_to_hbm [thread:$0]  %s1356, 4096, %s1354, %s1330, 128, 128, 8
        $region56: #{tpu_custom_call.1} parent=35 // pred_fallthru
          _
        // Predicated region
        $region57: #{tpu_custom_call.1} parent=35 // pred_check
          %p1362 = pneg %p185
        $region58: #{tpu_custom_call.1} parent=35 // pred_check_branch
          %1364 = sbr.rel (%p1362) target = $region60
        $region59: #{tpu_custom_call.1} parent=35 // pred_region
          %s1365 = smul.u32 32, %s34
          %s1367 = ssub.s32 4096, 4096
          %1368 = vsyncadd %s1335, %s1367
          %s1369 = smul.addr %s33, 32
          %s1370 = sadd.s32 %s1365, %s1369
          %s1371 = smul.addr %s1370, 128
          %s1372 = scalar_lea.hbm %s5, %s1371
          %s1373 = sshll.u32 %s1338, 4
          %s1374 = int_to_ptr.vmem [resolvable:$true] %s1373
          %1379 = dma.vmem_to_hbm [thread:$0]  %s1374, 4096, %s1372, %s1335, 128, 128, 8
        $region60: #{tpu_custom_call.1} parent=35 // pred_fallthru
          _
        // Predicated region
        $region61: #{tpu_custom_call.1} parent=35 // pred_check
          %p1380 = pneg %p213
        $region62: #{tpu_custom_call.1} parent=35 // pred_check_branch
          %1382 = sbr.rel (%p1380) target = $region64
        $region63: #{tpu_custom_call.1} parent=35 // pred_region
          %s1383 = smul.u32 32, %s34
          %s1385 = ssub.s32 4096, 4096
          %1386 = vsyncadd %s1340, %s1385
          %s1387 = smul.addr %s33, 32
          %s1388 = sadd.s32 %s1383, %s1387
          %s1389 = smul.addr %s1388, 128
          %s1390 = scalar_lea.hbm %s6, %s1389
          %s1391 = sshll.u32 %s1343, 4
          %s1392 = int_to_ptr.vmem [resolvable:$true] %s1391
          %1397 = dma.vmem_to_hbm [thread:$0]  %s1392, 4096, %s1390, %s1340, 128, 128, 8
        $region64: #{tpu_custom_call.1} parent=35 // pred_fallthru
          _
      $region36: #{tpu_custom_call.1} parent=5 // pred_fallthru
        _
      %p1398 = scmp.le.s32.totalorder 2, %s24
      // Predicated region
      $region65: #{tpu_custom_call.1} parent=5 // pred_check
        %p1399 = pneg %p1398
      $region66: #{tpu_custom_call.1} parent=5 // pred_check_branch
        %1401 = sbr.rel (%p1399) target = $region68
      $region67: #{tpu_custom_call.1} parent=5 // pred_region
        %s1402 = ssub.s32 %s24, 2
        // Predicated region
        $region69: #{tpu_custom_call.1} parent=67 // pred_check
          %p1403 = pneg %p163
        $region70: #{tpu_custom_call.1} parent=67 // pred_check_branch
          %1405 = sbr.rel (%p1403) target = $region72
        $region71: #{tpu_custom_call.1} parent=67 // pred_region
          %s1406 = sand.u32 %s148, 1
          %s1407 = scalar_lea.sflag [#allocation4], %s1406
          %s1408 = sand.u32 %s148, 1
          %s1409 = smul.addr %s1408, 256
          %s1410 = scalar_lea.vmem [#allocation10], %s1409
          %1411 = dma.done %s1407, 4096
        $region72: #{tpu_custom_call.1} parent=67 // pred_fallthru
          _
        // Predicated region
        $region73: #{tpu_custom_call.1} parent=67 // pred_check
          %p1412 = pneg %p191
        $region74: #{tpu_custom_call.1} parent=67 // pred_check_branch
          %1414 = sbr.rel (%p1412) target = $region76
        $region75: #{tpu_custom_call.1} parent=67 // pred_region
          %s1415 = sand.u32 %s30, 1
          %s1416 = scalar_lea.sflag [#allocation12], %s1415
          %s1417 = sand.u32 %s176, 1
          %s1418 = smul.addr %s1417, 256
          %s1419 = scalar_lea.vmem [#allocation11], %s1418
          %1420 = dma.done %s1416, 4096
        $region76: #{tpu_custom_call.1} parent=67 // pred_fallthru
          _
        // Predicated region
        $region77: #{tpu_custom_call.1} parent=67 // pred_check
          %p1421 = pneg %p219
        $region78: #{tpu_custom_call.1} parent=67 // pred_check_branch
          %1423 = sbr.rel (%p1421) target = $region80
        $region79: #{tpu_custom_call.1} parent=67 // pred_region
          %s1424 = sand.u32 %s30, 1
          %s1425 = scalar_lea.sflag [#allocation12], %s1424
          %s1426 = sand.u32 %s204, 1
          %s1427 = smul.addr %s1426, 256
          %s1428 = scalar_lea.vmem [#allocation13], %s1427
          %1429 = dma.done %s1425, 4096
        $region80: #{tpu_custom_call.1} parent=67 // pred_fallthru
          _
      $region68: #{tpu_custom_call.1} parent=5 // pred_fallthru
        _
    $region6: #{tpu_custom_call.1} parent=1 // loop_footer
      %s28 = sadd.s32 1, %s24
    $region7: #{tpu_custom_call.1} parent=1 // loop_footer_branch
      %23 = sbr.rel target = $region3
    $region8: #{tpu_custom_call.1} parent=1 // loop_exit
      _
    %1430 = vsyncpa [#allocation3], 1
    %s1431 = scalar_lea.sflag [#allocation3], 1
    %1432 = vsyncpa %s1431, 1
    %1433 = vsyncpa [#allocation6], 1
    %1434 = vsyncpa [#allocation9], 1
    %s1435 = scalar_lea.sflag [#allocation9], 1
    %1436 = vsyncpa %s1435, 1
    %1437 = vsyncpa [#allocation4], 1
    %s1438 = scalar_lea.sflag [#allocation4], 1
    %1439 = vsyncpa %s1438, 1
    %1440 = vsyncpa [#allocation12], 1
    %s1441 = scalar_lea.sflag [#allocation12], 1
    %1442 = vsyncpa %s1441, 1

</llo_original>
